<compile_context>
chip_gen: v6e
topology: v6e:2x2x1
jax: 0.10.0
libtpu: 0.0.40
codegen_flags: <defaults>
</compile_context>

<pallas_src>
import functools

import jax
import jax.numpy as jnp
import numpy as np
from jax import lax
from jax.experimental import pallas as pl
from jax.experimental.pallas import tpu as pltpu


# ----------------------------- Pallas kernel ------------------------------ #
def _corner_kernel(B, H, W, x_ref, mask_ref, w1_ref, b1_ref, w2_ref, b2_ref,
                   w3_ref, b3_ref, coord_ref, out_ref):
    HW = H * W
    N = B * HW
    offs = [(oy, ox) for oy in (-1, 0, 1) for ox in (-1, 0, 1)]   # tap order = (dy,dx)

    masks = mask_ref[...]                                         # (9, N), loaded once

    def im2col(feat):
        # feat: (C, N) with lane index p = b*HW + h*W + w.
        # Tap (oy, ox): shifted[p] = feat[p + oy*W + ox], zeroed where the source
        # (h+oy, w+ox) falls outside the HxW image (mask also kills any
        # cross-batch wrap of the cyclic roll).
        taps = []
        for t, (oy, ox) in enumerate(offs):
            k = oy * W + ox
            if k == 0:
                taps.append(feat)
            else:
                shifted = pltpu.roll(feat, shift=(-k) % N, axis=1)
                taps.append(shifted * masks[t:t + 1, :])
        return jnp.concatenate(taps, axis=0)                      # (9*C, N)

    def conv3x3(feat, w_ref, b_ref):
        # single MXU GEMM: (Cout, 9*Cin) x (9*Cin, N) -> (Cout, N)
        return jnp.dot(w_ref[...], im2col(feat),
                       preferred_element_type=jnp.float32) + b_ref[...]

    # ---- conv tower (f32) ----
    f1 = jnp.maximum(conv3x3(x_ref[...], w1_ref, b1_ref), 0.0)    # (Cc, N)
    f2 = jnp.maximum(conv3x3(f1, w2_ref, b2_ref), 0.0)            # (Cc, N)
    score = conv3x3(f2, w3_ref, b3_ref)                           # (2, N) [tl, br]

    # ---- per-image soft-argmax (coords already divided by img_sz) ----
    cx = coord_ref[0:1, :]                                        # (1, HW)
    cy = coord_ref[1:2, :]                                        # (1, HW)
    rows = []
    for b in range(B):                                            # B is small/static
        seg = score[:, b * HW:(b + 1) * HW]                       # lane-aligned slice
        m = jnp.max(seg, axis=1, keepdims=True)                   # (2, 1)
        e = jnp.exp(seg - m)                                      # (2, HW)
        inv_z = 1.0 / jnp.sum(e, axis=1, keepdims=True)           # (2, 1)
        ex = jnp.sum(e * cx, axis=1, keepdims=True) * inv_z       # (2, 1)  [x_tl, x_br]
        ey = jnp.sum(e * cy, axis=1, keepdims=True) * inv_z       # (2, 1)  [y_tl, y_br]
        rows.append(jnp.concatenate(
            [ex[0:1, :], ey[0:1, :], ex[1:2, :], ey[1:2, :]], axis=1))  # (1, 4)
    out_ref[...] = jnp.concatenate(rows, axis=0)                  # one (B, 4) store


# ------------------------------- wrapper ----------------------------------- #
def corner_predictor_pallas(x_nchw, params, feat_sz, stride):
    """params: (w1, b1, w2, b2, w3, b3) with w* in HWIO and b* of shape (Cout,)."""
    w1, b1, w2, b2, w3, b3 = params
    B, Cin, H, W = x_nchw.shape
    assert H == feat_sz and W == feat_sz
    Cc = w1.shape[-1]
    HW = H * W
    N = B * HW
    img_sz = float(feat_sz * stride)

    # channels on sublanes, (batch, spatial) on lanes: (Cin, B*H*W)
    x = jnp.transpose(x_nchw, (1, 0, 2, 3)).reshape(Cin, N).astype(jnp.float32)

    # pad input channels to a multiple of 8 sublanes (zero channels / zero weights)
    Cp = max(8, ((Cin + 7) // 8) * 8)
    if Cp != Cin:
        x = jnp.pad(x, ((0, Cp - Cin), (0, 0)))
        w1 = jnp.pad(w1, ((0, 0), (0, 0), (0, Cp - Cin), (0, 0)))

    def flat_w(w):  # HWIO (3,3,ci,co) -> (co, 9*ci), row index = (dy*3+dx)*ci + c
        return jnp.transpose(w, (3, 0, 1, 2)).reshape(w.shape[3], -1).astype(jnp.float32)

    w1f, w2f, w3f = flat_w(w1), flat_w(w2), flat_w(w3)
    b1c = b1.reshape(-1, 1).astype(jnp.float32)
    b2c = b2.reshape(-1, 1).astype(jnp.float32)
    b3c = b3.reshape(-1, 1).astype(jnp.float32)

    # lane-dense coords, pre-normalized by img_sz:
    #   coord_x[p] = ((p %  fs)+0.5)*stride / img_sz
    #   coord_y[p] = ((p // fs)+0.5)*stride / img_sz
    indice = (np.arange(feat_sz, dtype=np.float32) + 0.5) * stride
    coord = np.stack([np.tile(indice, feat_sz),
                      np.repeat(indice, feat_sz)], axis=0) / img_sz      # (2, HW)
    coord = jnp.asarray(coord, jnp.float32)

    # border-validity masks for the 9 taps, over the flattened (b,h,w) lane axis
    lane = np.arange(N)
    wp = lane % W
    hp = (lane // W) % H
    masks = np.empty((9, N), np.float32)
    t = 0
    for oy in (-1, 0, 1):
        for ox in (-1, 0, 1):
            masks[t] = ((hp + oy >= 0) & (hp + oy < H) &
                        (wp + ox >= 0) & (wp + ox < W)).astype(np.float32)
            t += 1
    masks = jnp.asarray(masks)

    kernel = functools.partial(_corner_kernel, B, H, W)
    spec = lambda shape: pl.BlockSpec(shape, lambda i: (0, 0))
    return pl.pallas_call(
        kernel,
        out_shape=jax.ShapeDtypeStruct((B, 4), jnp.float32),
        grid_spec=pltpu.PrefetchScalarGridSpec(
            num_scalar_prefetch=0,
            grid=(1,),                               # whole batch in one invocation
            in_specs=[
                spec((Cp, N)),                       # x
                spec((9, N)),                        # tap masks
                spec((Cc, 9 * Cp)), spec((Cc, 1)),   # conv1
                spec((Cc, 9 * Cc)), spec((Cc, 1)),   # conv2
                spec((2, 9 * Cc)), spec((2, 1)),     # conv3
                spec((2, HW)),                       # coords / img_sz
            ],
            out_specs=pl.BlockSpec((B, 4), lambda i: (0, 0)),
        ),
        compiler_params=pltpu.CompilerParams(
            dimension_semantics=("arbitrary",)),
    )(x, masks, w1f, b1c, w2f, b2c, w3f, b3c, coord)


# -------------------- deterministic parameter construction ----------------- #
def _bn_params(key, c):
    ks = jax.random.split(key, 4)
    gamma = 1.0 + 0.1 * jax.random.normal(ks[0], (c,), jnp.float32)
    beta = 0.1 * jax.random.normal(ks[1], (c,), jnp.float32)
    mean = 0.1 * jax.random.normal(ks[2], (c,), jnp.float32)
    var = 1.0 + 0.1 * jnp.abs(jax.random.normal(ks[3], (c,), jnp.float32))
    return gamma, beta, mean, var


def repvgg_fused(key, cin, cout, eps=1e-5):
    """RepVGGBlock (3x3+BN || 1x1+BN || id-BN if cin==cout) fused to one OIHW 3x3 conv + bias."""
    ks = jax.random.split(key, 5)
    w3 = 0.1 * jax.random.normal(ks[0], (cout, cin, 3, 3), jnp.float32)
    w1 = 0.1 * jax.random.normal(ks[1], (cout, cin, 1, 1), jnp.float32)
    g3, be3, m3, v3 = _bn_params(ks[2], cout)
    g1, be1, m1, v1 = _bn_params(ks[3], cout)
    s3 = g3 / jnp.sqrt(v3 + eps)
    s1 = g1 / jnp.sqrt(v1 + eps)
    wf = w3 * s3[:, None, None, None]
    wf = wf.at[:, :, 1, 1].add(w1[:, :, 0, 0] * s1[:, None])
    bf = (be3 - m3 * s3) + (be1 - m1 * s1)
    if cin == cout:
        gi, bei, mi, vi = _bn_params(ks[4], cout)
        si = gi / jnp.sqrt(vi + eps)
        wf = wf.at[jnp.arange(cout), jnp.arange(cout), 1, 1].add(si)
        bf = bf + (bei - mi * si)
    return wf, bf


# ------------------------- pure-JAX reference ------------------------------ #
def reference_forward(x_nchw, params, feat_sz, stride):
    w1, b1, w2, b2, w3, b3 = params
    img_sz = feat_sz * stride
    x = jnp.transpose(x_nchw, (0, 2, 3, 1))
    dn = ('NHWC', 'HWIO', 'NHWC')

    def conv(x, w, b):
        y = lax.conv_general_dilated(x, w, (1, 1), ((1, 1), (1, 1)),
                                     dimension_numbers=dn)
        return y + b[None, None, None, :]

    f1 = jax.nn.relu(conv(x, w1, b1))
    f2 = jax.nn.relu(conv(f1, w2, b2))
    s = conv(f2, w3, b3)                                    # (B, H, W, 2)

    B = x.shape[0]
    indice = (jnp.arange(feat_sz, dtype=jnp.float32) + 0.5) * stride
    cx = jnp.tile(indice, feat_sz)
    cy = jnp.repeat(indice, feat_sz)

    def soft_argmax(score_map):                             # (B, H, W)
        sv = score_map.reshape(B, -1)
        p = jax.nn.softmax(sv, axis=1)
        return jnp.sum(cx * p, axis=1), jnp.sum(cy * p, axis=1)

    xtl, ytl = soft_argmax(s[..., 0])
    xbr, ybr = soft_argmax(s[..., 1])
    return jnp.stack([xtl, ytl, xbr, ybr], axis=1) / img_sz


# --------------------------------- main ------------------------------------ #
if __name__ == "__main__":
    feat_sz, stride = 16, 4        # small shapes; module defaults are 20 / 16
    inplanes, channel = 4, 8
    B = 2

    key = jax.random.PRNGKey(0)
    kx, k1, k2, k3a, k3b = jax.random.split(key, 5)

    x = jax.random.normal(kx, (B, inplanes, feat_sz, feat_sz), jnp.float32)

    w1_oihw, b1 = repvgg_fused(k1, inplanes, channel)
    w2_oihw, b2 = repvgg_fused(k2, channel, channel)
    w3_oihw = 0.1 * jax.random.normal(k3a, (2, channel, 3, 3), jnp.float32)
    b3 = 0.1 * jax.random.normal(k3b, (2,), jnp.float32)

    to_hwio = lambda w: jnp.transpose(w, (2, 3, 1, 0))      # OIHW -> HWIO
    params = (to_hwio(w1_oihw), b1, to_hwio(w2_oihw), b2, to_hwio(w3_oihw), b3)

    out = corner_predictor_pallas(x, params, feat_sz, stride)
    out = jax.block_until_ready(out)

    ref = reference_forward(x, params, feat_sz, stride)
    np.testing.assert_allclose(np.asarray(out), np.asarray(ref),
                               rtol=1e-3, atol=1e-3)
    print("KERNEL_OK")
</pallas_src>

<mosaic_0001>
module attributes {stable_mosaic.version = 11 : i64} {
  func.func @_corner_kernel(%arg0: i32, %arg1: memref<8x512xf32, #tpu.memory_space<vmem>>, %arg2: memref<9x512xf32, #tpu.memory_space<vmem>>, %arg3: memref<8x72xf32, #tpu.memory_space<vmem>>, %arg4: memref<8x1xf32, #tpu.memory_space<vmem>>, %arg5: memref<8x72xf32, #tpu.memory_space<vmem>>, %arg6: memref<8x1xf32, #tpu.memory_space<vmem>>, %arg7: memref<2x72xf32, #tpu.memory_space<vmem>>, %arg8: memref<2x1xf32, #tpu.memory_space<vmem>>, %arg9: memref<2x256xf32, #tpu.memory_space<vmem>>, %arg10: memref<2x4xf32, #tpu.memory_space<vmem>>) attributes {dimension_semantics = [#tpu.dimension_semantics<arbitrary>], iteration_bounds = array<i64: 1>, scalar_prefetch = 0 : i64, scratch_operands = 0 : i64, tpu.core_type = #tpu.core_type<tc>, window_params = [{pipeline_mode = #tpu.pipeline_mode<synchronous>, transform_indices = @transform_0, window_bounds = array<i64: 8, 512>}, {pipeline_mode = #tpu.pipeline_mode<synchronous>, transform_indices = @transform_1, window_bounds = array<i64: 9, 512>}, {pipeline_mode = #tpu.pipeline_mode<synchronous>, transform_indices = @transform_2, window_bounds = array<i64: 8, 72>}, {pipeline_mode = #tpu.pipeline_mode<synchronous>, transform_indices = @transform_3, window_bounds = array<i64: 8, 1>}, {pipeline_mode = #tpu.pipeline_mode<synchronous>, transform_indices = @transform_4, window_bounds = array<i64: 8, 72>}, {pipeline_mode = #tpu.pipeline_mode<synchronous>, transform_indices = @transform_5, window_bounds = array<i64: 8, 1>}, {pipeline_mode = #tpu.pipeline_mode<synchronous>, transform_indices = @transform_6, window_bounds = array<i64: 2, 72>}, {pipeline_mode = #tpu.pipeline_mode<synchronous>, transform_indices = @transform_7, window_bounds = array<i64: 2, 1>}, {pipeline_mode = #tpu.pipeline_mode<synchronous>, transform_indices = @transform_8, window_bounds = array<i64: 2, 256>}, {pipeline_mode = #tpu.pipeline_mode<synchronous>, transform_indices = @transform_9, window_bounds = array<i64: 2, 4>}]} {
    %c0 = arith.constant 0 : index
    %c0_0 = arith.constant 0 : index
    %0 = vector.load %arg2[%c0, %c0_0] : memref<9x512xf32, #tpu.memory_space<vmem>>, vector<9x512xf32>
    %c0_1 = arith.constant 0 : index
    %c0_2 = arith.constant 0 : index
    %1 = vector.load %arg1[%c0_1, %c0_2] : memref<8x512xf32, #tpu.memory_space<vmem>>, vector<8x512xf32>
    %c0_3 = arith.constant 0 : index
    %c0_4 = arith.constant 0 : index
    %2 = vector.load %arg3[%c0_3, %c0_4] : memref<8x72xf32, #tpu.memory_space<vmem>>, vector<8x72xf32>
    %c17_i32 = arith.constant 17 : i32
    %3 = tpu.dynamic_rotate %1 by %c17_i32 dim 1 : vector<8x512xf32>, i32 -> vector<8x512xf32>
    %4 = vector.extract_strided_slice %0 {offsets = [0, 0], sizes = [1, 512], strides = [1, 1]} : vector<9x512xf32> to vector<1x512xf32>
    %5 = vector.broadcast %4 : vector<1x512xf32> to vector<8x512xf32>
    %6 = arith.mulf %3, %5 : vector<8x512xf32>
    %c16_i32 = arith.constant 16 : i32
    %7 = tpu.dynamic_rotate %1 by %c16_i32 dim 1 : vector<8x512xf32>, i32 -> vector<8x512xf32>
    %8 = vector.extract_strided_slice %0 {offsets = [1, 0], sizes = [1, 512], strides = [1, 1]} : vector<9x512xf32> to vector<1x512xf32>
    %9 = vector.broadcast %8 : vector<1x512xf32> to vector<8x512xf32>
    %10 = arith.mulf %7, %9 : vector<8x512xf32>
    %c15_i32 = arith.constant 15 : i32
    %11 = tpu.dynamic_rotate %1 by %c15_i32 dim 1 : vector<8x512xf32>, i32 -> vector<8x512xf32>
    %12 = vector.extract_strided_slice %0 {offsets = [2, 0], sizes = [1, 512], strides = [1, 1]} : vector<9x512xf32> to vector<1x512xf32>
    %13 = vector.broadcast %12 : vector<1x512xf32> to vector<8x512xf32>
    %14 = arith.mulf %11, %13 : vector<8x512xf32>
    %c1_i32 = arith.constant 1 : i32
    %15 = tpu.dynamic_rotate %1 by %c1_i32 dim 1 : vector<8x512xf32>, i32 -> vector<8x512xf32>
    %16 = vector.extract_strided_slice %0 {offsets = [3, 0], sizes = [1, 512], strides = [1, 1]} : vector<9x512xf32> to vector<1x512xf32>
    %17 = vector.broadcast %16 : vector<1x512xf32> to vector<8x512xf32>
    %18 = arith.mulf %15, %17 : vector<8x512xf32>
    %c511_i32 = arith.constant 511 : i32
    %19 = tpu.dynamic_rotate %1 by %c511_i32 dim 1 : vector<8x512xf32>, i32 -> vector<8x512xf32>
    %20 = vector.extract_strided_slice %0 {offsets = [5, 0], sizes = [1, 512], strides = [1, 1]} : vector<9x512xf32> to vector<1x512xf32>
    %21 = vector.broadcast %20 : vector<1x512xf32> to vector<8x512xf32>
    %22 = arith.mulf %19, %21 : vector<8x512xf32>
    %c497_i32 = arith.constant 497 : i32
    %23 = tpu.dynamic_rotate %1 by %c497_i32 dim 1 : vector<8x512xf32>, i32 -> vector<8x512xf32>
    %24 = vector.extract_strided_slice %0 {offsets = [6, 0], sizes = [1, 512], strides = [1, 1]} : vector<9x512xf32> to vector<1x512xf32>
    %25 = vector.broadcast %24 : vector<1x512xf32> to vector<8x512xf32>
    %26 = arith.mulf %23, %25 : vector<8x512xf32>
    %c496_i32 = arith.constant 496 : i32
    %27 = tpu.dynamic_rotate %1 by %c496_i32 dim 1 : vector<8x512xf32>, i32 -> vector<8x512xf32>
    %28 = vector.extract_strided_slice %0 {offsets = [7, 0], sizes = [1, 512], strides = [1, 1]} : vector<9x512xf32> to vector<1x512xf32>
    %29 = vector.broadcast %28 : vector<1x512xf32> to vector<8x512xf32>
    %30 = arith.mulf %27, %29 : vector<8x512xf32>
    %c495_i32 = arith.constant 495 : i32
    %31 = tpu.dynamic_rotate %1 by %c495_i32 dim 1 : vector<8x512xf32>, i32 -> vector<8x512xf32>
    %32 = vector.extract_strided_slice %0 {offsets = [8, 0], sizes = [1, 512], strides = [1, 1]} : vector<9x512xf32> to vector<1x512xf32>
    %33 = vector.broadcast %32 : vector<1x512xf32> to vector<8x512xf32>
    %34 = arith.mulf %31, %33 : vector<8x512xf32>
    %35 = tpu.concatenate %6, %10, %14, %18, %1, %22, %26, %30, %34 in 0 : vector<8x512xf32>, vector<8x512xf32>, vector<8x512xf32>, vector<8x512xf32>, vector<8x512xf32>, vector<8x512xf32>, vector<8x512xf32>, vector<8x512xf32>, vector<8x512xf32> -> vector<72x512xf32>
    %cst = arith.constant dense<0.000000e+00> : vector<8x512xf32>
    %36 = tpu.matmul %2, %35, %cst {dimension_numbers = #tpu.dot_dimension_numbers<[1], [0], [0], [1], [0, 0, 1, 1], [], []>} : vector<8x72xf32>, vector<72x512xf32>, vector<8x512xf32> -> vector<8x512xf32>
    %c0_5 = arith.constant 0 : index
    %c0_6 = arith.constant 0 : index
    %37 = vector.load %arg4[%c0_5, %c0_6] : memref<8x1xf32, #tpu.memory_space<vmem>>, vector<8x1xf32>
    %38 = vector.broadcast %37 : vector<8x1xf32> to vector<8x512xf32>
    %39 = arith.addf %36, %38 : vector<8x512xf32>
    %cst_7 = arith.constant 0.000000e+00 : f32
    %40 = vector.broadcast %cst_7 : f32 to vector<8x512xf32>
    %41 = arith.maximumf %39, %40 : vector<8x512xf32>
    %c0_8 = arith.constant 0 : index
    %c0_9 = arith.constant 0 : index
    %42 = vector.load %arg5[%c0_8, %c0_9] : memref<8x72xf32, #tpu.memory_space<vmem>>, vector<8x72xf32>
    %c17_i32_10 = arith.constant 17 : i32
    %43 = tpu.dynamic_rotate %41 by %c17_i32_10 dim 1 : vector<8x512xf32>, i32 -> vector<8x512xf32>
    %44 = vector.extract_strided_slice %0 {offsets = [0, 0], sizes = [1, 512], strides = [1, 1]} : vector<9x512xf32> to vector<1x512xf32>
    %45 = vector.broadcast %44 : vector<1x512xf32> to vector<8x512xf32>
    %46 = arith.mulf %43, %45 : vector<8x512xf32>
    %c16_i32_11 = arith.constant 16 : i32
    %47 = tpu.dynamic_rotate %41 by %c16_i32_11 dim 1 : vector<8x512xf32>, i32 -> vector<8x512xf32>
    %48 = vector.extract_strided_slice %0 {offsets = [1, 0], sizes = [1, 512], strides = [1, 1]} : vector<9x512xf32> to vector<1x512xf32>
    %49 = vector.broadcast %48 : vector<1x512xf32> to vector<8x512xf32>
    %50 = arith.mulf %47, %49 : vector<8x512xf32>
    %c15_i32_12 = arith.constant 15 : i32
    %51 = tpu.dynamic_rotate %41 by %c15_i32_12 dim 1 : vector<8x512xf32>, i32 -> vector<8x512xf32>
    %52 = vector.extract_strided_slice %0 {offsets = [2, 0], sizes = [1, 512], strides = [1, 1]} : vector<9x512xf32> to vector<1x512xf32>
    %53 = vector.broadcast %52 : vector<1x512xf32> to vector<8x512xf32>
    %54 = arith.mulf %51, %53 : vector<8x512xf32>
    %c1_i32_13 = arith.constant 1 : i32
    %55 = tpu.dynamic_rotate %41 by %c1_i32_13 dim 1 : vector<8x512xf32>, i32 -> vector<8x512xf32>
    %56 = vector.extract_strided_slice %0 {offsets = [3, 0], sizes = [1, 512], strides = [1, 1]} : vector<9x512xf32> to vector<1x512xf32>
    %57 = vector.broadcast %56 : vector<1x512xf32> to vector<8x512xf32>
    %58 = arith.mulf %55, %57 : vector<8x512xf32>
    %c511_i32_14 = arith.constant 511 : i32
    %59 = tpu.dynamic_rotate %41 by %c511_i32_14 dim 1 : vector<8x512xf32>, i32 -> vector<8x512xf32>
    %60 = vector.extract_strided_slice %0 {offsets = [5, 0], sizes = [1, 512], strides = [1, 1]} : vector<9x512xf32> to vector<1x512xf32>
    %61 = vector.broadcast %60 : vector<1x512xf32> to vector<8x512xf32>
    %62 = arith.mulf %59, %61 : vector<8x512xf32>
    %c497_i32_15 = arith.constant 497 : i32
    %63 = tpu.dynamic_rotate %41 by %c497_i32_15 dim 1 : vector<8x512xf32>, i32 -> vector<8x512xf32>
    %64 = vector.extract_strided_slice %0 {offsets = [6, 0], sizes = [1, 512], strides = [1, 1]} : vector<9x512xf32> to vector<1x512xf32>
    %65 = vector.broadcast %64 : vector<1x512xf32> to vector<8x512xf32>
    %66 = arith.mulf %63, %65 : vector<8x512xf32>
    %c496_i32_16 = arith.constant 496 : i32
    %67 = tpu.dynamic_rotate %41 by %c496_i32_16 dim 1 : vector<8x512xf32>, i32 -> vector<8x512xf32>
    %68 = vector.extract_strided_slice %0 {offsets = [7, 0], sizes = [1, 512], strides = [1, 1]} : vector<9x512xf32> to vector<1x512xf32>
    %69 = vector.broadcast %68 : vector<1x512xf32> to vector<8x512xf32>
    %70 = arith.mulf %67, %69 : vector<8x512xf32>
    %c495_i32_17 = arith.constant 495 : i32
    %71 = tpu.dynamic_rotate %41 by %c495_i32_17 dim 1 : vector<8x512xf32>, i32 -> vector<8x512xf32>
    %72 = vector.extract_strided_slice %0 {offsets = [8, 0], sizes = [1, 512], strides = [1, 1]} : vector<9x512xf32> to vector<1x512xf32>
    %73 = vector.broadcast %72 : vector<1x512xf32> to vector<8x512xf32>
    %74 = arith.mulf %71, %73 : vector<8x512xf32>
    %75 = tpu.concatenate %46, %50, %54, %58, %41, %62, %66, %70, %74 in 0 : vector<8x512xf32>, vector<8x512xf32>, vector<8x512xf32>, vector<8x512xf32>, vector<8x512xf32>, vector<8x512xf32>, vector<8x512xf32>, vector<8x512xf32>, vector<8x512xf32> -> vector<72x512xf32>
    %cst_18 = arith.constant dense<0.000000e+00> : vector<8x512xf32>
    %76 = tpu.matmul %42, %75, %cst_18 {dimension_numbers = #tpu.dot_dimension_numbers<[1], [0], [0], [1], [0, 0, 1, 1], [], []>} : vector<8x72xf32>, vector<72x512xf32>, vector<8x512xf32> -> vector<8x512xf32>
    %c0_19 = arith.constant 0 : index
    %c0_20 = arith.constant 0 : index
    %77 = vector.load %arg6[%c0_19, %c0_20] : memref<8x1xf32, #tpu.memory_space<vmem>>, vector<8x1xf32>
    %78 = vector.broadcast %77 : vector<8x1xf32> to vector<8x512xf32>
    %79 = arith.addf %76, %78 : vector<8x512xf32>
    %cst_21 = arith.constant 0.000000e+00 : f32
    %80 = vector.broadcast %cst_21 : f32 to vector<8x512xf32>
    %81 = arith.maximumf %79, %80 : vector<8x512xf32>
    %c0_22 = arith.constant 0 : index
    %c0_23 = arith.constant 0 : index
    %82 = vector.load %arg7[%c0_22, %c0_23] : memref<2x72xf32, #tpu.memory_space<vmem>>, vector<2x72xf32>
    %c17_i32_24 = arith.constant 17 : i32
    %83 = tpu.dynamic_rotate %81 by %c17_i32_24 dim 1 : vector<8x512xf32>, i32 -> vector<8x512xf32>
    %84 = vector.extract_strided_slice %0 {offsets = [0, 0], sizes = [1, 512], strides = [1, 1]} : vector<9x512xf32> to vector<1x512xf32>
    %85 = vector.broadcast %84 : vector<1x512xf32> to vector<8x512xf32>
    %86 = arith.mulf %83, %85 : vector<8x512xf32>
    %c16_i32_25 = arith.constant 16 : i32
    %87 = tpu.dynamic_rotate %81 by %c16_i32_25 dim 1 : vector<8x512xf32>, i32 -> vector<8x512xf32>
    %88 = vector.extract_strided_slice %0 {offsets = [1, 0], sizes = [1, 512], strides = [1, 1]} : vector<9x512xf32> to vector<1x512xf32>
    %89 = vector.broadcast %88 : vector<1x512xf32> to vector<8x512xf32>
    %90 = arith.mulf %87, %89 : vector<8x512xf32>
    %c15_i32_26 = arith.constant 15 : i32
    %91 = tpu.dynamic_rotate %81 by %c15_i32_26 dim 1 : vector<8x512xf32>, i32 -> vector<8x512xf32>
    %92 = vector.extract_strided_slice %0 {offsets = [2, 0], sizes = [1, 512], strides = [1, 1]} : vector<9x512xf32> to vector<1x512xf32>
    %93 = vector.broadcast %92 : vector<1x512xf32> to vector<8x512xf32>
    %94 = arith.mulf %91, %93 : vector<8x512xf32>
    %c1_i32_27 = arith.constant 1 : i32
    %95 = tpu.dynamic_rotate %81 by %c1_i32_27 dim 1 : vector<8x512xf32>, i32 -> vector<8x512xf32>
    %96 = vector.extract_strided_slice %0 {offsets = [3, 0], sizes = [1, 512], strides = [1, 1]} : vector<9x512xf32> to vector<1x512xf32>
    %97 = vector.broadcast %96 : vector<1x512xf32> to vector<8x512xf32>
    %98 = arith.mulf %95, %97 : vector<8x512xf32>
    %c511_i32_28 = arith.constant 511 : i32
    %99 = tpu.dynamic_rotate %81 by %c511_i32_28 dim 1 : vector<8x512xf32>, i32 -> vector<8x512xf32>
    %100 = vector.extract_strided_slice %0 {offsets = [5, 0], sizes = [1, 512], strides = [1, 1]} : vector<9x512xf32> to vector<1x512xf32>
    %101 = vector.broadcast %100 : vector<1x512xf32> to vector<8x512xf32>
    %102 = arith.mulf %99, %101 : vector<8x512xf32>
    %c497_i32_29 = arith.constant 497 : i32
    %103 = tpu.dynamic_rotate %81 by %c497_i32_29 dim 1 : vector<8x512xf32>, i32 -> vector<8x512xf32>
    %104 = vector.extract_strided_slice %0 {offsets = [6, 0], sizes = [1, 512], strides = [1, 1]} : vector<9x512xf32> to vector<1x512xf32>
    %105 = vector.broadcast %104 : vector<1x512xf32> to vector<8x512xf32>
    %106 = arith.mulf %103, %105 : vector<8x512xf32>
    %c496_i32_30 = arith.constant 496 : i32
    %107 = tpu.dynamic_rotate %81 by %c496_i32_30 dim 1 : vector<8x512xf32>, i32 -> vector<8x512xf32>
    %108 = vector.extract_strided_slice %0 {offsets = [7, 0], sizes = [1, 512], strides = [1, 1]} : vector<9x512xf32> to vector<1x512xf32>
    %109 = vector.broadcast %108 : vector<1x512xf32> to vector<8x512xf32>
    %110 = arith.mulf %107, %109 : vector<8x512xf32>
    %c495_i32_31 = arith.constant 495 : i32
    %111 = tpu.dynamic_rotate %81 by %c495_i32_31 dim 1 : vector<8x512xf32>, i32 -> vector<8x512xf32>
    %112 = vector.extract_strided_slice %0 {offsets = [8, 0], sizes = [1, 512], strides = [1, 1]} : vector<9x512xf32> to vector<1x512xf32>
    %113 = vector.broadcast %112 : vector<1x512xf32> to vector<8x512xf32>
    %114 = arith.mulf %111, %113 : vector<8x512xf32>
    %115 = tpu.concatenate %86, %90, %94, %98, %81, %102, %106, %110, %114 in 0 : vector<8x512xf32>, vector<8x512xf32>, vector<8x512xf32>, vector<8x512xf32>, vector<8x512xf32>, vector<8x512xf32>, vector<8x512xf32>, vector<8x512xf32>, vector<8x512xf32> -> vector<72x512xf32>
    %cst_32 = arith.constant dense<0.000000e+00> : vector<2x512xf32>
    %116 = tpu.matmul %82, %115, %cst_32 {dimension_numbers = #tpu.dot_dimension_numbers<[1], [0], [0], [1], [0, 0, 1, 1], [], []>} : vector<2x72xf32>, vector<72x512xf32>, vector<2x512xf32> -> vector<2x512xf32>
    %c0_33 = arith.constant 0 : index
    %c0_34 = arith.constant 0 : index
    %117 = vector.load %arg8[%c0_33, %c0_34] : memref<2x1xf32, #tpu.memory_space<vmem>>, vector<2x1xf32>
    %118 = vector.broadcast %117 : vector<2x1xf32> to vector<2x512xf32>
    %119 = arith.addf %116, %118 : vector<2x512xf32>
    %c0_35 = arith.constant 0 : index
    %c0_36 = arith.constant 0 : index
    %120 = vector.load %arg9[%c0_35, %c0_36] : memref<2x256xf32, #tpu.memory_space<vmem>>, vector<1x256xf32>
    %c1 = arith.constant 1 : index
    %c0_37 = arith.constant 0 : index
    %121 = vector.load %arg9[%c1, %c0_37] : memref<2x256xf32, #tpu.memory_space<vmem>>, vector<1x256xf32>
    %122 = vector.extract_strided_slice %119 {offsets = [0, 0], sizes = [2, 256], strides = [1, 1]} : vector<2x512xf32> to vector<2x256xf32>
    %cst_38 = arith.constant dense<0xFF800000> : vector<2xf32>
    %123 = vector.multi_reduction <maximumf>, %122, %cst_38 [1] : vector<2x256xf32> to vector<2xf32>
    %124 = vector.shape_cast %123 : vector<2xf32> to vector<2x1xf32>
    %125 = vector.broadcast %124 : vector<2x1xf32> to vector<2x256xf32>
    %126 = arith.subf %122, %125 : vector<2x256xf32>
    %127 = math.exp %126 : vector<2x256xf32>
    %cst_39 = arith.constant dense<0.000000e+00> : vector<2xf32>
    %128 = vector.multi_reduction <add>, %127, %cst_39 [1] : vector<2x256xf32> to vector<2xf32>
    %129 = vector.shape_cast %128 : vector<2xf32> to vector<2x1xf32>
    %cst_40 = arith.constant 1.000000e+00 : f32
    %130 = vector.broadcast %cst_40 : f32 to vector<2x1xf32>
    %131 = arith.divf %130, %129 : vector<2x1xf32>
    %132 = vector.broadcast %120 : vector<1x256xf32> to vector<2x256xf32>
    %133 = arith.mulf %127, %132 : vector<2x256xf32>
    %cst_41 = arith.constant dense<0.000000e+00> : vector<2xf32>
    %134 = vector.multi_reduction <add>, %133, %cst_41 [1] : vector<2x256xf32> to vector<2xf32>
    %135 = vector.shape_cast %134 : vector<2xf32> to vector<2x1xf32>
    %136 = arith.mulf %135, %131 : vector<2x1xf32>
    %137 = vector.broadcast %121 : vector<1x256xf32> to vector<2x256xf32>
    %138 = arith.mulf %127, %137 : vector<2x256xf32>
    %cst_42 = arith.constant dense<0.000000e+00> : vector<2xf32>
    %139 = vector.multi_reduction <add>, %138, %cst_42 [1] : vector<2x256xf32> to vector<2xf32>
    %140 = vector.shape_cast %139 : vector<2xf32> to vector<2x1xf32>
    %141 = arith.mulf %140, %131 : vector<2x1xf32>
    %142 = vector.extract_strided_slice %136 {offsets = [0, 0], sizes = [1, 1], strides = [1, 1]} : vector<2x1xf32> to vector<1x1xf32>
    %143 = vector.extract_strided_slice %141 {offsets = [0, 0], sizes = [1, 1], strides = [1, 1]} : vector<2x1xf32> to vector<1x1xf32>
    %144 = vector.extract_strided_slice %136 {offsets = [1, 0], sizes = [1, 1], strides = [1, 1]} : vector<2x1xf32> to vector<1x1xf32>
    %145 = vector.extract_strided_slice %141 {offsets = [1, 0], sizes = [1, 1], strides = [1, 1]} : vector<2x1xf32> to vector<1x1xf32>
    %146 = tpu.concatenate %142, %143, %144, %145 in 1 : vector<1x1xf32>, vector<1x1xf32>, vector<1x1xf32>, vector<1x1xf32> -> vector<1x4xf32>
    %147 = vector.extract_strided_slice %119 {offsets = [0, 256], sizes = [2, 256], strides = [1, 1]} : vector<2x512xf32> to vector<2x256xf32>
    %cst_43 = arith.constant dense<0xFF800000> : vector<2xf32>
    %148 = vector.multi_reduction <maximumf>, %147, %cst_43 [1] : vector<2x256xf32> to vector<2xf32>
    %149 = vector.shape_cast %148 : vector<2xf32> to vector<2x1xf32>
    %150 = vector.broadcast %149 : vector<2x1xf32> to vector<2x256xf32>
    %151 = arith.subf %147, %150 : vector<2x256xf32>
    %152 = math.exp %151 : vector<2x256xf32>
    %cst_44 = arith.constant dense<0.000000e+00> : vector<2xf32>
    %153 = vector.multi_reduction <add>, %152, %cst_44 [1] : vector<2x256xf32> to vector<2xf32>
    %154 = vector.shape_cast %153 : vector<2xf32> to vector<2x1xf32>
    %cst_45 = arith.constant 1.000000e+00 : f32
    %155 = vector.broadcast %cst_45 : f32 to vector<2x1xf32>
    %156 = arith.divf %155, %154 : vector<2x1xf32>
    %157 = vector.broadcast %120 : vector<1x256xf32> to vector<2x256xf32>
    %158 = arith.mulf %152, %157 : vector<2x256xf32>
    %cst_46 = arith.constant dense<0.000000e+00> : vector<2xf32>
    %159 = vector.multi_reduction <add>, %158, %cst_46 [1] : vector<2x256xf32> to vector<2xf32>
    %160 = vector.shape_cast %159 : vector<2xf32> to vector<2x1xf32>
    %161 = arith.mulf %160, %156 : vector<2x1xf32>
    %162 = vector.broadcast %121 : vector<1x256xf32> to vector<2x256xf32>
    %163 = arith.mulf %152, %162 : vector<2x256xf32>
    %cst_47 = arith.constant dense<0.000000e+00> : vector<2xf32>
    %164 = vector.multi_reduction <add>, %163, %cst_47 [1] : vector<2x256xf32> to vector<2xf32>
    %165 = vector.shape_cast %164 : vector<2xf32> to vector<2x1xf32>
    %166 = arith.mulf %165, %156 : vector<2x1xf32>
    %167 = vector.extract_strided_slice %161 {offsets = [0, 0], sizes = [1, 1], strides = [1, 1]} : vector<2x1xf32> to vector<1x1xf32>
    %168 = vector.extract_strided_slice %166 {offsets = [0, 0], sizes = [1, 1], strides = [1, 1]} : vector<2x1xf32> to vector<1x1xf32>
    %169 = vector.extract_strided_slice %161 {offsets = [1, 0], sizes = [1, 1], strides = [1, 1]} : vector<2x1xf32> to vector<1x1xf32>
    %170 = vector.extract_strided_slice %166 {offsets = [1, 0], sizes = [1, 1], strides = [1, 1]} : vector<2x1xf32> to vector<1x1xf32>
    %171 = tpu.concatenate %167, %168, %169, %170 in 1 : vector<1x1xf32>, vector<1x1xf32>, vector<1x1xf32>, vector<1x1xf32> -> vector<1x4xf32>
    %172 = tpu.concatenate %146, %171 in 0 : vector<1x4xf32>, vector<1x4xf32> -> vector<2x4xf32>
    %c0_48 = arith.constant 0 : index
    %c0_49 = arith.constant 0 : index
    %173 = vector.load %arg10[%c0_48, %c0_49] : memref<2x4xf32, #tpu.memory_space<vmem>>, vector<2x4xf32>
    tpu.vector_store %arg10[%c0_48, %c0_49], %172 {strides = array<i32>} : memref<2x4xf32, #tpu.memory_space<vmem>>, vector<2x4xf32>,
    return
  }
  func.func @transform_0(%arg0: i32) -> (i32, i32) {
    %c0_i32 = arith.constant 0 : i32
    %c0_i32_0 = arith.constant 0 : i32
    %c0_i32_1 = arith.constant 0 : i32
    return %c0_i32, %c0_i32_0 : i32, i32
  }
  func.func @transform_1(%arg0: i32) -> (i32, i32) {
    %c0_i32 = arith.constant 0 : i32
    %c0_i32_0 = arith.constant 0 : i32
    %c0_i32_1 = arith.constant 0 : i32
    return %c0_i32, %c0_i32_0 : i32, i32
  }
  func.func @transform_2(%arg0: i32) -> (i32, i32) {
    %c0_i32 = arith.constant 0 : i32
    %c0_i32_0 = arith.constant 0 : i32
    %c0_i32_1 = arith.constant 0 : i32
    return %c0_i32, %c0_i32_0 : i32, i32
  }
  func.func @transform_3(%arg0: i32) -> (i32, i32) {
    %c0_i32 = arith.constant 0 : i32
    %c0_i32_0 = arith.constant 0 : i32
    %c0_i32_1 = arith.constant 0 : i32
    return %c0_i32, %c0_i32_0 : i32, i32
  }
  func.func @transform_4(%arg0: i32) -> (i32, i32) {
    %c0_i32 = arith.constant 0 : i32
    %c0_i32_0 = arith.constant 0 : i32
    %c0_i32_1 = arith.constant 0 : i32
    return %c0_i32, %c0_i32_0 : i32, i32
  }
  func.func @transform_5(%arg0: i32) -> (i32, i32) {
    %c0_i32 = arith.constant 0 : i32
    %c0_i32_0 = arith.constant 0 : i32
    %c0_i32_1 = arith.constant 0 : i32
    return %c0_i32, %c0_i32_0 : i32, i32
  }
  func.func @transform_6(%arg0: i32) -> (i32, i32) {
    %c0_i32 = arith.constant 0 : i32
    %c0_i32_0 = arith.constant 0 : i32
    %c0_i32_1 = arith.constant 0 : i32
    return %c0_i32, %c0_i32_0 : i32, i32
  }
  func.func @transform_7(%arg0: i32) -> (i32, i32) {
    %c0_i32 = arith.constant 0 : i32
    %c0_i32_0 = arith.constant 0 : i32
    %c0_i32_1 = arith.constant 0 : i32
    return %c0_i32, %c0_i32_0 : i32, i32
  }
  func.func @transform_8(%arg0: i32) -> (i32, i32) {
    %c0_i32 = arith.constant 0 : i32
    %c0_i32_0 = arith.constant 0 : i32
    %c0_i32_1 = arith.constant 0 : i32
    return %c0_i32, %c0_i32_0 : i32, i32
  }
  func.func @transform_9(%arg0: i32) -> (i32, i32) {
    %c0_i32 = arith.constant 0 : i32
    %c0_i32_0 = arith.constant 0 : i32
    %c0_i32_1 = arith.constant 0 : i32
    return %c0_i32, %c0_i32_0 : i32, i32
  }
}

</mosaic_0001>

<llo_original>
// kernel: tpu_custom_call.1
$region0: #{tpu_custom_call.1}
  #allocation0 [shape = 'u32[]', space=smem, size = 0x4, offset = 0x4, fixed_abs, tag = 'smem constant byte address 0x4 - core index']
  #allocation1 [shape = 'u32[144,128]{1,0:T(1,128)}', space=vmem, size = 0x12000, scoped, tag = 'internal scratch']
  %s0 = inlined_call_operand.hbm [shape: f32[8,512], index: 0, kind: input, shape index: {}]
  %s1 = inlined_call_operand.hbm [shape: f32[9,512], index: 1, kind: input, shape index: {}]
  %s2 = inlined_call_operand.vmem [shape: f32[8,72], index: 2, kind: input, shape index: {}]
  %s3 = inlined_call_operand.vmem [shape: f32[8,1], index: 3, kind: input, shape index: {}]
  %s4 = inlined_call_operand.vmem [shape: f32[8,72], index: 4, kind: input, shape index: {}]
  %s5 = inlined_call_operand.vmem [shape: f32[8,1], index: 5, kind: input, shape index: {}]
  %s6 = inlined_call_operand.vmem [shape: f32[2,72], index: 6, kind: input, shape index: {}]
  %s7 = inlined_call_operand.vmem [shape: f32[2,1], index: 7, kind: input, shape index: {}]
  %s8 = inlined_call_operand.vmem [shape: f32[2,256], index: 8, kind: input, shape index: {}]
  %s9 = inlined_call_operand.hbm [shape: f32[2,4], index: 9, kind: output, shape index: {}]
  %s10 = sld [smem:[#allocation0]]
  $region54: #{tpu_custom_call.1} parent=0
    _
  %s12 = ssub.s32 1, %s10
  %s13 = scalar_select 0, %s12, %s10
  $region1: #{tpu_custom_call.1} parent=0
    #allocation2 [shape = 'u8[16384]{0}', space=vmem, size = 0x4000, scoped, tag = 'input window, operand 0, single buffered']
    #allocation3 [shape = 's32[1]{0}', space=sflag, size = 0x4, scoped, tag = 'scoped memory for tpu_custom_call.1']
    #allocation4 [shape = 's32[1]{0}', space=sflag, size = 0x4, scoped, tag = 'scoped memory for tpu_custom_call.1']
    #allocation5 [shape = 'u8[32768]{0}', space=vmem, size = 0x8000, scoped, tag = 'input window, operand 1, single buffered']
    #allocation6 [shape = 's32[1]{0}', space=sflag, size = 0x4, scoped, tag = 'scoped memory for tpu_custom_call.1']
    #allocation7 [shape = 'u8[1024]{0}', space=vmem, size = 0x400, scoped, tag = 'output window, operand 0, single buffered']
    %14 = vsyncpa [#allocation3], 0
    %15 = vsyncpa [#allocation6], 0
    %16 = vsyncpa [#allocation4], 0
    // Predicated region
    $region2: #{tpu_custom_call.1} parent=1 // pred_check
      _
    $region3: #{tpu_custom_call.1} parent=1 // pred_check_branch
      %18 = sbr.rel (0) target = $region5
    $region4: #{tpu_custom_call.1} parent=1 // pred_region
      %s20 = ssub.s32 512, 512
      %21 = vsyncadd [#allocation3], %s20
      %s23 = sshll.u32 [#allocation2], 4
      %s24 = int_to_ptr.vmem [resolvable:$true] %s23
      %26 = dma.hbm_to_vmem [thread:$0]  %s0, 512, %s24, [#allocation3]
    $region5: #{tpu_custom_call.1} parent=1 // pred_fallthru
      _
    // Predicated region
    $region6: #{tpu_custom_call.1} parent=1 // pred_check
      _
    $region7: #{tpu_custom_call.1} parent=1 // pred_check_branch
      %28 = sbr.rel (0) target = $region9
    $region8: #{tpu_custom_call.1} parent=1 // pred_region
      %s30 = ssub.s32 1024, 1024
      %31 = vsyncadd [#allocation6], %s30
      %s32 = sshll.u32 [#allocation5], 4
      %s33 = int_to_ptr.vmem [resolvable:$true] %s32
      %38 = dma.hbm_to_vmem [thread:$0]  %s1, 1024, %s33, [#allocation6], 512, 512, 32
    $region9: #{tpu_custom_call.1} parent=1 // pred_fallthru
      _
    // Predicated region
    $region10: #{tpu_custom_call.1} parent=1 // pred_check
      _
    $region11: #{tpu_custom_call.1} parent=1 // pred_check_branch
      %40 = sbr.rel (0) target = $region13
    $region12: #{tpu_custom_call.1} parent=1 // pred_region
      _
    $region13: #{tpu_custom_call.1} parent=1 // pred_fallthru
      _
    // Predicated region
    $region14: #{tpu_custom_call.1} parent=1 // pred_check
      _
    $region15: #{tpu_custom_call.1} parent=1 // pred_check_branch
      %42 = sbr.rel (0) target = $region17
    $region16: #{tpu_custom_call.1} parent=1 // pred_region
      _
    $region17: #{tpu_custom_call.1} parent=1 // pred_fallthru
      _
    // Predicated region
    $region18: #{tpu_custom_call.1} parent=1 // pred_check
      _
    $region19: #{tpu_custom_call.1} parent=1 // pred_check_branch
      %44 = sbr.rel (0) target = $region21
    $region20: #{tpu_custom_call.1} parent=1 // pred_region
      _
    $region21: #{tpu_custom_call.1} parent=1 // pred_fallthru
      _
    // Predicated region
    $region22: #{tpu_custom_call.1} parent=1 // pred_check
      _
    $region23: #{tpu_custom_call.1} parent=1 // pred_check_branch
      %46 = sbr.rel (0) target = $region25
    $region24: #{tpu_custom_call.1} parent=1 // pred_region
      _
    $region25: #{tpu_custom_call.1} parent=1 // pred_fallthru
      _
    // Predicated region
    $region26: #{tpu_custom_call.1} parent=1 // pred_check
      _
    $region27: #{tpu_custom_call.1} parent=1 // pred_check_branch
      %48 = sbr.rel (0) target = $region29
    $region28: #{tpu_custom_call.1} parent=1 // pred_region
      _
    $region29: #{tpu_custom_call.1} parent=1 // pred_fallthru
      _
    // Predicated region
    $region30: #{tpu_custom_call.1} parent=1 // pred_check
      _
    $region31: #{tpu_custom_call.1} parent=1 // pred_check_branch
      %50 = sbr.rel (0) target = $region33
    $region32: #{tpu_custom_call.1} parent=1 // pred_region
      _
    $region33: #{tpu_custom_call.1} parent=1 // pred_fallthru
      _
    // Predicated region
    $region34: #{tpu_custom_call.1} parent=1 // pred_check
      _
    $region35: #{tpu_custom_call.1} parent=1 // pred_check_branch
      %52 = sbr.rel (0) target = $region37
    $region36: #{tpu_custom_call.1} parent=1 // pred_region
      _
    $region37: #{tpu_custom_call.1} parent=1 // pred_fallthru
      _
    // Predicated region
    $region38: #{tpu_custom_call.1} parent=1 // pred_check
      _
    $region39: #{tpu_custom_call.1} parent=1 // pred_check_branch
      %54 = sbr.rel (0) target = $region41
    $region40: #{tpu_custom_call.1} parent=1 // pred_region
      %55 = dma.done [#allocation3], 512
    $region41: #{tpu_custom_call.1} parent=1 // pred_fallthru
      _
    // Predicated region
    $region42: #{tpu_custom_call.1} parent=1 // pred_check
      _
    $region43: #{tpu_custom_call.1} parent=1 // pred_check_branch
      %57 = sbr.rel (0) target = $region45
    $region44: #{tpu_custom_call.1} parent=1 // pred_region
      %58 = dma.done [#allocation6], 1024
    $region45: #{tpu_custom_call.1} parent=1 // pred_fallthru
      _
    %v59 = vld [vmem:[#allocation5] sm:$0xff]
    %v60 = vld [vmem:[#allocation5 + $0x8] sm:$0xff]
    %v61 = vld [vmem:[#allocation5 + $0x10] sm:$0xff]
    %v62 = vld [vmem:[#allocation5 + $0x18] sm:$0xff]
    %v63 = vld [vmem:[#allocation5 + $0x20] sm:$0x1]
    %v64 = vld [vmem:[#allocation5 + $0x28] sm:$0x1]
    %v65 = vld [vmem:[#allocation5 + $0x30] sm:$0x1]
    %v66 = vld [vmem:[#allocation5 + $0x38] sm:$0x1]
    %v67 = vld [vmem:[#allocation2] sm:$0xff]
    %v68 = vld [vmem:[#allocation2 + $0x8] sm:$0xff]
    %v69 = vld [vmem:[#allocation2 + $0x10] sm:$0xff]
    %v70 = vld [vmem:[#allocation2 + $0x18] sm:$0xff]
    %v71 = vld [vmem:[%s2] sm:$0xff]
    %72 = vrot.lane.b32.xlu0 %v67, 17
    %v73 = vpop.permute.xlu0 %72
    %74 = vrot.lane.b32.xlu0 %v68, 17
    %v75 = vpop.permute.xlu0 %74
    %76 = vrot.lane.b32.xlu0 %v69, 17
    %v77 = vpop.permute.xlu0 %76
    %78 = vrot.lane.b32.xlu0 %v70, 17
    %v79 = vpop.permute.xlu0 %78
    %v80 = vlaneseq
    %v81 = vand.u32 %v80, 127
    %vm82 = vcmp.lt.s32.totalorder %v81, 17
    %v83 = vsel %vm82, %v77, %v79
    %v84 = vsel %vm82, %v75, %v77
    %v85 = vsel %vm82, %v73, %v75
    %v86 = vsel %vm82, %v79, %v73
    %v87 = vlaneseq
    %v88 = vshrl.u32 %v87, 7
    %v89 = vsub.s32 0, %v88
    %v90 = vrot.slane %v59, %v89
    %v91 = vlaneseq
    %v92 = vshrl.u32 %v91, 7
    %v93 = vsub.s32 0, %v92
    %v94 = vrot.slane %v60, %v93
    %v95 = vlaneseq
    %v96 = vshrl.u32 %v95, 7
    %v97 = vsub.s32 0, %v96
    %v98 = vrot.slane %v61, %v97
    %v99 = vlaneseq
    %v100 = vshrl.u32 %v99, 7
    %v101 = vsub.s32 0, %v100
    %v102 = vrot.slane %v62, %v101
    %v103 = vmul.f32 %v86, %v90
    %v104 = vmul.f32 %v85, %v94
    %v105 = vmul.f32 %v84, %v98
    %v106 = vmul.f32 %v83, %v102
    %107 = vrot.lane.b32.xlu0 %v67, 16
    %v108 = vpop.permute.xlu0 %107
    %109 = vrot.lane.b32.xlu0 %v68, 16
    %v110 = vpop.permute.xlu0 %109
    %111 = vrot.lane.b32.xlu0 %v69, 16
    %v112 = vpop.permute.xlu0 %111
    %113 = vrot.lane.b32.xlu0 %v70, 16
    %v114 = vpop.permute.xlu0 %113
    %vm115 = vcmp.lt.s32.totalorder %v81, 16
    %v116 = vsel %vm115, %v112, %v114
    %v117 = vsel %vm115, %v110, %v112
    %v118 = vsel %vm115, %v108, %v110
    %v119 = vsel %vm115, %v114, %v108
    %v120 = vlaneseq
    %v121 = vshrl.u32 %v120, 7
    %v122 = vsub.s32 1, %v121
    %v123 = vrot.slane %v59, %v122
    %v124 = vlaneseq
    %v125 = vshrl.u32 %v124, 7
    %v126 = vsub.s32 1, %v125
    %v127 = vrot.slane %v60, %v126
    %v128 = vlaneseq
    %v129 = vshrl.u32 %v128, 7
    %v130 = vsub.s32 1, %v129
    %v131 = vrot.slane %v61, %v130
    %v132 = vlaneseq
    %v133 = vshrl.u32 %v132, 7
    %v134 = vsub.s32 1, %v133
    %v135 = vrot.slane %v62, %v134
    %v136 = vmul.f32 %v119, %v123
    %v137 = vmul.f32 %v118, %v127
    %v138 = vmul.f32 %v117, %v131
    %v139 = vmul.f32 %v116, %v135
    %140 = vrot.lane.b32.xlu0 %v67, 15
    %v141 = vpop.permute.xlu0 %140
    %142 = vrot.lane.b32.xlu0 %v68, 15
    %v143 = vpop.permute.xlu0 %142
    %144 = vrot.lane.b32.xlu0 %v69, 15
    %v145 = vpop.permute.xlu0 %144
    %146 = vrot.lane.b32.xlu0 %v70, 15
    %v147 = vpop.permute.xlu0 %146
    %vm148 = vcmp.lt.s32.totalorder %v81, 15
    %v149 = vsel %vm148, %v145, %v147
    %v150 = vsel %vm148, %v143, %v145
    %v151 = vsel %vm148, %v141, %v143
    %v152 = vsel %vm148, %v147, %v141
    %v153 = vlaneseq
    %v154 = vshrl.u32 %v153, 7
    %v155 = vsub.s32 2, %v154
    %v156 = vrot.slane %v59, %v155
    %v157 = vlaneseq
    %v158 = vshrl.u32 %v157, 7
    %v159 = vsub.s32 2, %v158
    %v160 = vrot.slane %v60, %v159
    %v161 = vlaneseq
    %v162 = vshrl.u32 %v161, 7
    %v163 = vsub.s32 2, %v162
    %v164 = vrot.slane %v61, %v163
    %v165 = vlaneseq
    %v166 = vshrl.u32 %v165, 7
    %v167 = vsub.s32 2, %v166
    %v168 = vrot.slane %v62, %v167
    %v169 = vmul.f32 %v152, %v156
    %v170 = vmul.f32 %v151, %v160
    %v171 = vmul.f32 %v150, %v164
    %v172 = vmul.f32 %v149, %v168
    %173 = vrot.lane.b32.xlu0 %v67, 1
    %v174 = vpop.permute.xlu0 %173
    %175 = vrot.lane.b32.xlu0 %v68, 1
    %v176 = vpop.permute.xlu0 %175
    %177 = vrot.lane.b32.xlu0 %v69, 1
    %v178 = vpop.permute.xlu0 %177
    %179 = vrot.lane.b32.xlu0 %v70, 1
    %v180 = vpop.permute.xlu0 %179
    %vm181 = vcmp.lt.s32.totalorder %v81, 1
    %v182 = vsel %vm181, %v178, %v180
    %v183 = vsel %vm181, %v176, %v178
    %v184 = vsel %vm181, %v174, %v176
    %v185 = vsel %vm181, %v180, %v174
    %v186 = vlaneseq
    %v187 = vshrl.u32 %v186, 7
    %v188 = vsub.s32 3, %v187
    %v189 = vrot.slane %v59, %v188
    %v190 = vlaneseq
    %v191 = vshrl.u32 %v190, 7
    %v192 = vsub.s32 3, %v191
    %v193 = vrot.slane %v60, %v192
    %v194 = vlaneseq
    %v195 = vshrl.u32 %v194, 7
    %v196 = vsub.s32 3, %v195
    %v197 = vrot.slane %v61, %v196
    %v198 = vlaneseq
    %v199 = vshrl.u32 %v198, 7
    %v200 = vsub.s32 3, %v199
    %v201 = vrot.slane %v62, %v200
    %v202 = vmul.f32 %v185, %v189
    %v203 = vmul.f32 %v184, %v193
    %v204 = vmul.f32 %v183, %v197
    %v205 = vmul.f32 %v182, %v201
    %206 = vrot.lane.b32.xlu0 %v67, 127
    %v207 = vpop.permute.xlu0 %206
    %208 = vrot.lane.b32.xlu0 %v68, 127
    %v209 = vpop.permute.xlu0 %208
    %210 = vrot.lane.b32.xlu0 %v69, 127
    %v211 = vpop.permute.xlu0 %210
    %212 = vrot.lane.b32.xlu0 %v70, 127
    %v213 = vpop.permute.xlu0 %212
    %vm214 = vcmp.lt.s32.totalorder %v81, 127
    %v215 = vsel %vm214, %v211, %v213
    %v216 = vsel %vm214, %v209, %v211
    %v217 = vsel %vm214, %v207, %v209
    %v218 = vsel %vm214, %v213, %v207
    %v219 = vlaneseq
    %v220 = vshrl.u32 %v219, 7
    %v221 = vsub.s32 5, %v220
    %v222 = vrot.slane %v59, %v221
    %v223 = vlaneseq
    %v224 = vshrl.u32 %v223, 7
    %v225 = vsub.s32 5, %v224
    %v226 = vrot.slane %v60, %v225
    %v227 = vlaneseq
    %v228 = vshrl.u32 %v227, 7
    %v229 = vsub.s32 5, %v228
    %v230 = vrot.slane %v61, %v229
    %v231 = vlaneseq
    %v232 = vshrl.u32 %v231, 7
    %v233 = vsub.s32 5, %v232
    %v234 = vrot.slane %v62, %v233
    %v235 = vmul.f32 %v217, %v222
    %v236 = vmul.f32 %v216, %v226
    %v237 = vmul.f32 %v215, %v230
    %v238 = vmul.f32 %v218, %v234
    %239 = vrot.lane.b32.xlu0 %v67, 113
    %v240 = vpop.permute.xlu0 %239
    %241 = vrot.lane.b32.xlu0 %v68, 113
    %v242 = vpop.permute.xlu0 %241
    %243 = vrot.lane.b32.xlu0 %v69, 113
    %v244 = vpop.permute.xlu0 %243
    %245 = vrot.lane.b32.xlu0 %v70, 113
    %v246 = vpop.permute.xlu0 %245
    %vm247 = vcmp.lt.s32.totalorder %v81, 113
    %v248 = vsel %vm247, %v244, %v246
    %v249 = vsel %vm247, %v242, %v244
    %v250 = vsel %vm247, %v240, %v242
    %v251 = vsel %vm247, %v246, %v240
    %v252 = vlaneseq
    %v253 = vshrl.u32 %v252, 7
    %v254 = vsub.s32 6, %v253
    %v255 = vrot.slane %v59, %v254
    %v256 = vlaneseq
    %v257 = vshrl.u32 %v256, 7
    %v258 = vsub.s32 6, %v257
    %v259 = vrot.slane %v60, %v258
    %v260 = vlaneseq
    %v261 = vshrl.u32 %v260, 7
    %v262 = vsub.s32 6, %v261
    %v263 = vrot.slane %v61, %v262
    %v264 = vlaneseq
    %v265 = vshrl.u32 %v264, 7
    %v266 = vsub.s32 6, %v265
    %v267 = vrot.slane %v62, %v266
    %v268 = vmul.f32 %v250, %v255
    %v269 = vmul.f32 %v249, %v259
    %v270 = vmul.f32 %v248, %v263
    %v271 = vmul.f32 %v251, %v267
    %272 = vrot.lane.b32.xlu0 %v67, 112
    %v273 = vpop.permute.xlu0 %272
    %274 = vrot.lane.b32.xlu0 %v68, 112
    %v275 = vpop.permute.xlu0 %274
    %276 = vrot.lane.b32.xlu0 %v69, 112
    %v277 = vpop.permute.xlu0 %276
    %278 = vrot.lane.b32.xlu0 %v70, 112
    %v279 = vpop.permute.xlu0 %278
    %vm280 = vcmp.lt.s32.totalorder %v81, 112
    %v281 = vsel %vm280, %v277, %v279
    %v282 = vsel %vm280, %v275, %v277
    %v283 = vsel %vm280, %v273, %v275
    %v284 = vsel %vm280, %v279, %v273
    %v285 = vlaneseq
    %v286 = vshrl.u32 %v285, 7
    %v287 = vsub.s32 7, %v286
    %v288 = vrot.slane %v59, %v287
    %v289 = vlaneseq
    %v290 = vshrl.u32 %v289, 7
    %v291 = vsub.s32 7, %v290
    %v292 = vrot.slane %v60, %v291
    %v293 = vlaneseq
    %v294 = vshrl.u32 %v293, 7
    %v295 = vsub.s32 7, %v294
    %v296 = vrot.slane %v61, %v295
    %v297 = vlaneseq
    %v298 = vshrl.u32 %v297, 7
    %v299 = vsub.s32 7, %v298
    %v300 = vrot.slane %v62, %v299
    %v301 = vmul.f32 %v283, %v288
    %v302 = vmul.f32 %v282, %v292
    %v303 = vmul.f32 %v281, %v296
    %v304 = vmul.f32 %v284, %v300
    %305 = vrot.lane.b32.xlu0 %v67, 111
    %v306 = vpop.permute.xlu0 %305
    %307 = vrot.lane.b32.xlu0 %v68, 111
    %v308 = vpop.permute.xlu0 %307
    %309 = vrot.lane.b32.xlu0 %v69, 111
    %v310 = vpop.permute.xlu0 %309
    %311 = vrot.lane.b32.xlu0 %v70, 111
    %v312 = vpop.permute.xlu0 %311
    %vm313 = vcmp.lt.s32.totalorder %v81, 111
    %v314 = vsel %vm313, %v310, %v312
    %v315 = vsel %vm313, %v308, %v310
    %v316 = vsel %vm313, %v306, %v308
    %v317 = vsel %vm313, %v312, %v306
    %v318 = vlaneseq
    %v319 = vshrl.u32 %v318, 7
    %v320 = vsub.s32 0, %v319
    %v321 = vrot.slane %v63, %v320
    %v322 = vlaneseq
    %v323 = vshrl.u32 %v322, 7
    %v324 = vsub.s32 0, %v323
    %v325 = vrot.slane %v64, %v324
    %v326 = vlaneseq
    %v327 = vshrl.u32 %v326, 7
    %v328 = vsub.s32 0, %v327
    %v329 = vrot.slane %v65, %v328
    %v330 = vlaneseq
    %v331 = vshrl.u32 %v330, 7
    %v332 = vsub.s32 0, %v331
    %v333 = vrot.slane %v66, %v332
    %v334 = vmul.f32 %v316, %v321
    %v335 = vmul.f32 %v315, %v325
    %v336 = vmul.f32 %v314, %v329
    %v337 = vmul.f32 %v317, %v333
    %v338 = vld [vmem:[%s3] sm:$0xff]
    %340 = vset.pattern.permute.xlu0 0
    %341 = vperm.xlu0 %340, %v338
    %v342 = vpop.permute.xlu0 %341
    %vm344 = vcmask 588800
    %v346 = vsel %vm344, %v71, 0
    %348 = vmatprep.subr.mxu0 0.0
    %349 = vmatpush1.msra.mxu0 0.0
    %350 = vmatprep.subr.mxu0 0.0
    %351 = vmatpush1.msra.mxu0 0.0
    %352 = vmatprep.subr.mxu0 0.0
    %353 = vmatpush1.msra.mxu0 0.0
    %354 = vmatprep.subr.mxu0 0.0
    %355 = vmatpush1.msra.mxu0 0.0
    %356 = vmatprep.subr.mxu0 0.0
    %357 = vmatpush1.msra.mxu0 0.0
    %358 = vmatprep.subr.mxu0 0.0
    %359 = vmatpush1.msra.mxu0 0.0
    %360 = vmatprep.subr.mxu0 0.0
    %361 = vmatpush1.msra.mxu0 0.0
    %362 = vmatprep.subr.mxu0 %v335
    %363 = vmatpush1.msra.mxu0 %v334
    %364 = vmatprep.subr.mxu0 %v302
    %365 = vmatpush1.msra.mxu0 %v301
    %366 = vmatprep.subr.mxu0 %v269
    %367 = vmatpush1.msra.mxu0 %v268
    %368 = vmatprep.subr.mxu0 %v236
    %369 = vmatpush1.msra.mxu0 %v235
    %370 = vmatprep.subr.mxu0 %v68
    %371 = vmatpush1.msra.mxu0 %v67
    %372 = vmatprep.subr.mxu0 %v203
    %373 = vmatpush1.msra.mxu0 %v202
    %374 = vmatprep.subr.mxu0 %v170
    %375 = vmatpush1.msra.mxu0 %v169
    %376 = vmatprep.subr.mxu0 %v137
    %377 = vmatpush1.msra.mxu0 %v136
    %378 = vmatprep.subr.mxu0 %v104
    %379 = vmatpush1.msra.mxu0 %v103
    %380 = vmatprep.subr.mxu0 0.0
    %381 = vmatpush2.msra.mxu0 0.0
    %382 = vmatprep.subr.mxu0 0.0
    %383 = vmatpush2.msra.mxu0 0.0
    %384 = vmatprep.subr.mxu0 0.0
    %385 = vmatpush2.msra.mxu0 0.0
    %386 = vmatprep.subr.mxu0 0.0
    %387 = vmatpush2.msra.mxu0 0.0
    %388 = vmatprep.subr.mxu0 0.0
    %389 = vmatpush2.msra.mxu0 0.0
    %390 = vmatprep.subr.mxu0 0.0
    %391 = vmatpush2.msra.mxu0 0.0
    %392 = vmatprep.subr.mxu0 0.0
    %393 = vmatpush2.msra.mxu0 0.0
    %394 = vmatprep.subr.mxu0 0.0
    %395 = vmatpush2.msra.mxu0 0.0
    %396 = vmatprep.subr.mxu0 0.0
    %397 = vmatpush2.msra.mxu0 0.0
    %398 = vmatprep.subr.mxu0 0.0
    %399 = vmatpush2.msra.mxu0 0.0
    %400 = vmatprep.subr.mxu0 0.0
    %401 = vmatpush2.msra.mxu0 0.0
    %402 = vmatprep.subr.mxu0 0.0
    %403 = vmatpush2.msra.mxu0 0.0
    %404 = vmatprep.subr.mxu0 0.0
    %405 = vmatpush2.msra.mxu0 0.0
    %406 = vmatprep.subr.mxu0 0.0
    %407 = vmatpush2.msra.mxu0 0.0
    %408 = vmatprep.subr.mxu0 0.0
    %409 = vmatpush2.msra.mxu0 0.0
    %410 = vmatprep.subr.mxu0 0.0
    %411 = vmatpush2.msra.mxu0 0.0
    %412 = vmatprep.mubr.f32.mxu0 0.0
    %413 = vmatmul.mubr.f32.gmra.mxu0 %v346
    %v414 = vpop.f32.mrf.mxu0
    %v415 = vadd.f32 %v342, %v414
    %v416 = vpop.f32.mrf.mxu0
    %v417 = vadd.f32 %v342, %v416
    %418 = vdwg.mxu0
    %419 = vmatprep.subr.mxu0 0.0
    %420 = vmatpush1.msra.mxu0 0.0
    %421 = vmatprep.subr.mxu0 0.0
    %422 = vmatpush1.msra.mxu0 0.0
    %423 = vmatprep.subr.mxu0 0.0
    %424 = vmatpush1.msra.mxu0 0.0
    %425 = vmatprep.subr.mxu0 0.0
    %426 = vmatpush1.msra.mxu0 0.0
    %427 = vmatprep.subr.mxu0 0.0
    %428 = vmatpush1.msra.mxu0 0.0
    %429 = vmatprep.subr.mxu0 0.0
    %430 = vmatpush1.msra.mxu0 0.0
    %431 = vmatprep.subr.mxu0 0.0
    %432 = vmatpush1.msra.mxu0 0.0
    %433 = vmatprep.subr.mxu0 %v337
    %434 = vmatpush1.msra.mxu0 %v336
    %435 = vmatprep.subr.mxu0 %v304
    %436 = vmatpush1.msra.mxu0 %v303
    %437 = vmatprep.subr.mxu0 %v271
    %438 = vmatpush1.msra.mxu0 %v270
    %439 = vmatprep.subr.mxu0 %v238
    %440 = vmatpush1.msra.mxu0 %v237
    %441 = vmatprep.subr.mxu0 %v70
    %442 = vmatpush1.msra.mxu0 %v69
    %443 = vmatprep.subr.mxu0 %v205
    %444 = vmatpush1.msra.mxu0 %v204
    %445 = vmatprep.subr.mxu0 %v172
    %446 = vmatpush1.msra.mxu0 %v171
    %447 = vmatprep.subr.mxu0 %v139
    %448 = vmatpush1.msra.mxu0 %v138
    %449 = vmatprep.subr.mxu0 %v106
    %450 = vmatpush1.msra.mxu0 %v105
    %451 = vmatprep.subr.mxu0 0.0
    %452 = vmatpush2.msra.mxu0 0.0
    %453 = vmatprep.subr.mxu0 0.0
    %454 = vmatpush2.msra.mxu0 0.0
    %455 = vmatprep.subr.mxu0 0.0
    %456 = vmatpush2.msra.mxu0 0.0
    %457 = vmatprep.subr.mxu0 0.0
    %458 = vmatpush2.msra.mxu0 0.0
    %459 = vmatprep.subr.mxu0 0.0
    %460 = vmatpush2.msra.mxu0 0.0
    %461 = vmatprep.subr.mxu0 0.0
    %462 = vmatpush2.msra.mxu0 0.0
    %463 = vmatprep.subr.mxu0 0.0
    %464 = vmatpush2.msra.mxu0 0.0
    %465 = vmatprep.subr.mxu0 0.0
    %466 = vmatpush2.msra.mxu0 0.0
    %467 = vmatprep.subr.mxu0 0.0
    %468 = vmatpush2.msra.mxu0 0.0
    %469 = vmatprep.subr.mxu0 0.0
    %470 = vmatpush2.msra.mxu0 0.0
    %471 = vmatprep.subr.mxu0 0.0
    %472 = vmatpush2.msra.mxu0 0.0
    %473 = vmatprep.subr.mxu0 0.0
    %474 = vmatpush2.msra.mxu0 0.0
    %475 = vmatprep.subr.mxu0 0.0
    %476 = vmatpush2.msra.mxu0 0.0
    %477 = vmatprep.subr.mxu0 0.0
    %478 = vmatpush2.msra.mxu0 0.0
    %479 = vmatprep.subr.mxu0 0.0
    %480 = vmatpush2.msra.mxu0 0.0
    %481 = vmatprep.subr.mxu0 0.0
    %482 = vmatpush2.msra.mxu0 0.0
    %483 = vmatprep.mubr.f32.mxu0 0.0
    %484 = vmatmul.mubr.f32.gmra.mxu0 %v346
    %v485 = vpop.f32.mrf.mxu0
    %v486 = vadd.f32 %v342, %v485
    %v487 = vpop.f32.mrf.mxu0
    %v488 = vadd.f32 %v342, %v487
    %489 = vdwg.mxu0
    %v490 = vmax.f32 %v415, 0.0
    %v491 = vmax.f32 %v417, 0.0
    %v492 = vmax.f32 %v486, 0.0
    %v493 = vmax.f32 %v488, 0.0
    %v494 = vld [vmem:[%s4] sm:$0xff]
    %495 = vrot.lane.b32.xlu0 %v490, 17
    %v496 = vpop.permute.xlu0 %495
    %497 = vrot.lane.b32.xlu0 %v491, 17
    %v498 = vpop.permute.xlu0 %497
    %499 = vrot.lane.b32.xlu0 %v492, 17
    %v500 = vpop.permute.xlu0 %499
    %501 = vrot.lane.b32.xlu0 %v493, 17
    %v502 = vpop.permute.xlu0 %501
    %v503 = vsel %vm82, %v500, %v502
    %v504 = vsel %vm82, %v498, %v500
    %v505 = vsel %vm82, %v496, %v498
    %v506 = vsel %vm82, %v502, %v496
    %v507 = vmul.f32 %v506, %v90
    %v508 = vmul.f32 %v505, %v94
    %v509 = vmul.f32 %v504, %v98
    %v510 = vmul.f32 %v503, %v102
    %511 = vrot.lane.b32.xlu0 %v490, 16
    %v512 = vpop.permute.xlu0 %511
    %513 = vrot.lane.b32.xlu0 %v491, 16
    %v514 = vpop.permute.xlu0 %513
    %515 = vrot.lane.b32.xlu0 %v492, 16
    %v516 = vpop.permute.xlu0 %515
    %517 = vrot.lane.b32.xlu0 %v493, 16
    %v518 = vpop.permute.xlu0 %517
    %v519 = vsel %vm115, %v516, %v518
    %v520 = vsel %vm115, %v514, %v516
    %v521 = vsel %vm115, %v512, %v514
    %v522 = vsel %vm115, %v518, %v512
    %v523 = vmul.f32 %v522, %v123
    %v524 = vmul.f32 %v521, %v127
    %v525 = vmul.f32 %v520, %v131
    %v526 = vmul.f32 %v519, %v135
    %527 = vrot.lane.b32.xlu0 %v490, 15
    %v528 = vpop.permute.xlu0 %527
    %529 = vrot.lane.b32.xlu0 %v491, 15
    %v530 = vpop.permute.xlu0 %529
    %531 = vrot.lane.b32.xlu0 %v492, 15
    %v532 = vpop.permute.xlu0 %531
    %533 = vrot.lane.b32.xlu0 %v493, 15
    %v534 = vpop.permute.xlu0 %533
    %v535 = vsel %vm148, %v532, %v534
    %v536 = vsel %vm148, %v530, %v532
    %v537 = vsel %vm148, %v528, %v530
    %v538 = vsel %vm148, %v534, %v528
    %v539 = vmul.f32 %v538, %v156
    %v540 = vmul.f32 %v537, %v160
    %v541 = vmul.f32 %v536, %v164
    %v542 = vmul.f32 %v535, %v168
    %543 = vrot.lane.b32.xlu0 %v490, 1
    %v544 = vpop.permute.xlu0 %543
    %545 = vrot.lane.b32.xlu0 %v491, 1
    %v546 = vpop.permute.xlu0 %545
    %547 = vrot.lane.b32.xlu0 %v492, 1
    %v548 = vpop.permute.xlu0 %547
    %549 = vrot.lane.b32.xlu0 %v493, 1
    %v550 = vpop.permute.xlu0 %549
    %v551 = vsel %vm181, %v548, %v550
    %v552 = vsel %vm181, %v546, %v548
    %v553 = vsel %vm181, %v544, %v546
    %v554 = vsel %vm181, %v550, %v544
    %v555 = vmul.f32 %v554, %v189
    %v556 = vmul.f32 %v553, %v193
    %v557 = vmul.f32 %v552, %v197
    %v558 = vmul.f32 %v551, %v201
    %559 = vrot.lane.b32.xlu0 %v490, 127
    %v560 = vpop.permute.xlu0 %559
    %561 = vrot.lane.b32.xlu0 %v491, 127
    %v562 = vpop.permute.xlu0 %561
    %563 = vrot.lane.b32.xlu0 %v492, 127
    %v564 = vpop.permute.xlu0 %563
    %565 = vrot.lane.b32.xlu0 %v493, 127
    %v566 = vpop.permute.xlu0 %565
    %v567 = vsel %vm214, %v564, %v566
    %v568 = vsel %vm214, %v562, %v564
    %v569 = vsel %vm214, %v560, %v562
    %v570 = vsel %vm214, %v566, %v560
    %v571 = vmul.f32 %v569, %v222
    %v572 = vmul.f32 %v568, %v226
    %v573 = vmul.f32 %v567, %v230
    %v574 = vmul.f32 %v570, %v234
    %575 = vrot.lane.b32.xlu0 %v490, 113
    %v576 = vpop.permute.xlu0 %575
    %577 = vrot.lane.b32.xlu0 %v491, 113
    %v578 = vpop.permute.xlu0 %577
    %579 = vrot.lane.b32.xlu0 %v492, 113
    %v580 = vpop.permute.xlu0 %579
    %581 = vrot.lane.b32.xlu0 %v493, 113
    %v582 = vpop.permute.xlu0 %581
    %v583 = vsel %vm247, %v580, %v582
    %v584 = vsel %vm247, %v578, %v580
    %v585 = vsel %vm247, %v576, %v578
    %v586 = vsel %vm247, %v582, %v576
    %v587 = vmul.f32 %v585, %v255
    %v588 = vmul.f32 %v584, %v259
    %v589 = vmul.f32 %v583, %v263
    %v590 = vmul.f32 %v586, %v267
    %591 = vrot.lane.b32.xlu0 %v490, 112
    %v592 = vpop.permute.xlu0 %591
    %593 = vrot.lane.b32.xlu0 %v491, 112
    %v594 = vpop.permute.xlu0 %593
    %595 = vrot.lane.b32.xlu0 %v492, 112
    %v596 = vpop.permute.xlu0 %595
    %597 = vrot.lane.b32.xlu0 %v493, 112
    %v598 = vpop.permute.xlu0 %597
    %v599 = vsel %vm280, %v596, %v598
    %v600 = vsel %vm280, %v594, %v596
    %v601 = vsel %vm280, %v592, %v594
    %v602 = vsel %vm280, %v598, %v592
    %v603 = vmul.f32 %v601, %v288
    %v604 = vmul.f32 %v600, %v292
    %v605 = vmul.f32 %v599, %v296
    %v606 = vmul.f32 %v602, %v300
    %607 = vrot.lane.b32.xlu0 %v490, 111
    %v608 = vpop.permute.xlu0 %607
    %609 = vrot.lane.b32.xlu0 %v491, 111
    %v610 = vpop.permute.xlu0 %609
    %611 = vrot.lane.b32.xlu0 %v492, 111
    %v612 = vpop.permute.xlu0 %611
    %613 = vrot.lane.b32.xlu0 %v493, 111
    %v614 = vpop.permute.xlu0 %613
    %v615 = vsel %vm313, %v612, %v614
    %v616 = vsel %vm313, %v610, %v612
    %v617 = vsel %vm313, %v608, %v610
    %v618 = vsel %vm313, %v614, %v608
    %v619 = vmul.f32 %v617, %v321
    %v620 = vmul.f32 %v616, %v325
    %v621 = vmul.f32 %v615, %v329
    %v622 = vmul.f32 %v618, %v333
    %v623 = vld [vmem:[%s5] sm:$0xff]
    %625 = vset.pattern.permute.xlu0 0
    %626 = vperm.xlu0 %625, %v623
    %v627 = vpop.permute.xlu0 %626
    %v630 = vsel %vm344, %v494, 0
    %632 = vmatprep.subr.mxu0 0.0
    %633 = vmatpush1.msra.mxu0 0.0
    %634 = vmatprep.subr.mxu0 0.0
    %635 = vmatpush1.msra.mxu0 0.0
    %636 = vmatprep.subr.mxu0 0.0
    %637 = vmatpush1.msra.mxu0 0.0
    %638 = vmatprep.subr.mxu0 0.0
    %639 = vmatpush1.msra.mxu0 0.0
    %640 = vmatprep.subr.mxu0 0.0
    %641 = vmatpush1.msra.mxu0 0.0
    %642 = vmatprep.subr.mxu0 0.0
    %643 = vmatpush1.msra.mxu0 0.0
    %644 = vmatprep.subr.mxu0 0.0
    %645 = vmatpush1.msra.mxu0 0.0
    %646 = vmatprep.subr.mxu0 %v620
    %647 = vmatpush1.msra.mxu0 %v619
    %648 = vmatprep.subr.mxu0 %v604
    %649 = vmatpush1.msra.mxu0 %v603
    %650 = vmatprep.subr.mxu0 %v588
    %651 = vmatpush1.msra.mxu0 %v587
    %652 = vmatprep.subr.mxu0 %v572
    %653 = vmatpush1.msra.mxu0 %v571
    %654 = vmatprep.subr.mxu0 %v491
    %655 = vmatpush1.msra.mxu0 %v490
    %656 = vmatprep.subr.mxu0 %v556
    %657 = vmatpush1.msra.mxu0 %v555
    %658 = vmatprep.subr.mxu0 %v540
    %659 = vmatpush1.msra.mxu0 %v539
    %660 = vmatprep.subr.mxu0 %v524
    %661 = vmatpush1.msra.mxu0 %v523
    %662 = vmatprep.subr.mxu0 %v508
    %663 = vmatpush1.msra.mxu0 %v507
    %664 = vmatprep.subr.mxu0 0.0
    %665 = vmatpush2.msra.mxu0 0.0
    %666 = vmatprep.subr.mxu0 0.0
    %667 = vmatpush2.msra.mxu0 0.0
    %668 = vmatprep.subr.mxu0 0.0
    %669 = vmatpush2.msra.mxu0 0.0
    %670 = vmatprep.subr.mxu0 0.0
    %671 = vmatpush2.msra.mxu0 0.0
    %672 = vmatprep.subr.mxu0 0.0
    %673 = vmatpush2.msra.mxu0 0.0
    %674 = vmatprep.subr.mxu0 0.0
    %675 = vmatpush2.msra.mxu0 0.0
    %676 = vmatprep.subr.mxu0 0.0
    %677 = vmatpush2.msra.mxu0 0.0
    %678 = vmatprep.subr.mxu0 0.0
    %679 = vmatpush2.msra.mxu0 0.0
    %680 = vmatprep.subr.mxu0 0.0
    %681 = vmatpush2.msra.mxu0 0.0
    %682 = vmatprep.subr.mxu0 0.0
    %683 = vmatpush2.msra.mxu0 0.0
    %684 = vmatprep.subr.mxu0 0.0
    %685 = vmatpush2.msra.mxu0 0.0
    %686 = vmatprep.subr.mxu0 0.0
    %687 = vmatpush2.msra.mxu0 0.0
    %688 = vmatprep.subr.mxu0 0.0
    %689 = vmatpush2.msra.mxu0 0.0
    %690 = vmatprep.subr.mxu0 0.0
    %691 = vmatpush2.msra.mxu0 0.0
    %692 = vmatprep.subr.mxu0 0.0
    %693 = vmatpush2.msra.mxu0 0.0
    %694 = vmatprep.subr.mxu0 0.0
    %695 = vmatpush2.msra.mxu0 0.0
    %696 = vmatprep.mubr.f32.mxu0 0.0
    %697 = vmatmul.mubr.f32.gmra.mxu0 %v630
    %v698 = vpop.f32.mrf.mxu0
    %v699 = vadd.f32 %v627, %v698
    %v700 = vpop.f32.mrf.mxu0
    %v701 = vadd.f32 %v627, %v700
    %702 = vdwg.mxu0
    %703 = vmatprep.subr.mxu0 0.0
    %704 = vmatpush1.msra.mxu0 0.0
    %705 = vmatprep.subr.mxu0 0.0
    %706 = vmatpush1.msra.mxu0 0.0
    %707 = vmatprep.subr.mxu0 0.0
    %708 = vmatpush1.msra.mxu0 0.0
    %709 = vmatprep.subr.mxu0 0.0
    %710 = vmatpush1.msra.mxu0 0.0
    %711 = vmatprep.subr.mxu0 0.0
    %712 = vmatpush1.msra.mxu0 0.0
    %713 = vmatprep.subr.mxu0 0.0
    %714 = vmatpush1.msra.mxu0 0.0
    %715 = vmatprep.subr.mxu0 0.0
    %716 = vmatpush1.msra.mxu0 0.0
    %717 = vmatprep.subr.mxu0 %v622
    %718 = vmatpush1.msra.mxu0 %v621
    %719 = vmatprep.subr.mxu0 %v606
    %720 = vmatpush1.msra.mxu0 %v605
    %721 = vmatprep.subr.mxu0 %v590
    %722 = vmatpush1.msra.mxu0 %v589
    %723 = vmatprep.subr.mxu0 %v574
    %724 = vmatpush1.msra.mxu0 %v573
    %725 = vmatprep.subr.mxu0 %v493
    %726 = vmatpush1.msra.mxu0 %v492
    %727 = vmatprep.subr.mxu0 %v558
    %728 = vmatpush1.msra.mxu0 %v557
    %729 = vmatprep.subr.mxu0 %v542
    %730 = vmatpush1.msra.mxu0 %v541
    %731 = vmatprep.subr.mxu0 %v526
    %732 = vmatpush1.msra.mxu0 %v525
    %733 = vmatprep.subr.mxu0 %v510
    %734 = vmatpush1.msra.mxu0 %v509
    %735 = vmatprep.subr.mxu0 0.0
    %736 = vmatpush2.msra.mxu0 0.0
    %737 = vmatprep.subr.mxu0 0.0
    %738 = vmatpush2.msra.mxu0 0.0
    %739 = vmatprep.subr.mxu0 0.0
    %740 = vmatpush2.msra.mxu0 0.0
    %741 = vmatprep.subr.mxu0 0.0
    %742 = vmatpush2.msra.mxu0 0.0
    %743 = vmatprep.subr.mxu0 0.0
    %744 = vmatpush2.msra.mxu0 0.0
    %745 = vmatprep.subr.mxu0 0.0
    %746 = vmatpush2.msra.mxu0 0.0
    %747 = vmatprep.subr.mxu0 0.0
    %748 = vmatpush2.msra.mxu0 0.0
    %749 = vmatprep.subr.mxu0 0.0
    %750 = vmatpush2.msra.mxu0 0.0
    %751 = vmatprep.subr.mxu0 0.0
    %752 = vmatpush2.msra.mxu0 0.0
    %753 = vmatprep.subr.mxu0 0.0
    %754 = vmatpush2.msra.mxu0 0.0
    %755 = vmatprep.subr.mxu0 0.0
    %756 = vmatpush2.msra.mxu0 0.0
    %757 = vmatprep.subr.mxu0 0.0
    %758 = vmatpush2.msra.mxu0 0.0
    %759 = vmatprep.subr.mxu0 0.0
    %760 = vmatpush2.msra.mxu0 0.0
    %761 = vmatprep.subr.mxu0 0.0
    %762 = vmatpush2.msra.mxu0 0.0
    %763 = vmatprep.subr.mxu0 0.0
    %764 = vmatpush2.msra.mxu0 0.0
    %765 = vmatprep.subr.mxu0 0.0
    %766 = vmatpush2.msra.mxu0 0.0
    %767 = vmatprep.mubr.f32.mxu0 0.0
    %768 = vmatmul.mubr.f32.gmra.mxu0 %v630
    %v769 = vpop.f32.mrf.mxu0
    %v770 = vadd.f32 %v627, %v769
    %v771 = vpop.f32.mrf.mxu0
    %v772 = vadd.f32 %v627, %v771
    %773 = vdwg.mxu0
    %v774 = vmax.f32 %v699, 0.0
    %v775 = vmax.f32 %v701, 0.0
    %v776 = vmax.f32 %v770, 0.0
    %v777 = vmax.f32 %v772, 0.0
    %v778 = vld [vmem:[%s6] sm:$0x3]
    %779 = vrot.lane.b32.xlu0 %v774, 17
    %v780 = vpop.permute.xlu0 %779
    %781 = vrot.lane.b32.xlu0 %v775, 17
    %v782 = vpop.permute.xlu0 %781
    %783 = vrot.lane.b32.xlu0 %v776, 17
    %v784 = vpop.permute.xlu0 %783
    %785 = vrot.lane.b32.xlu0 %v777, 17
    %v786 = vpop.permute.xlu0 %785
    %v787 = vsel %vm82, %v784, %v786
    %v788 = vsel %vm82, %v782, %v784
    %v789 = vsel %vm82, %v780, %v782
    %v790 = vsel %vm82, %v786, %v780
    %v791 = vmul.f32 %v790, %v90
    %v792 = vmul.f32 %v789, %v94
    %v793 = vmul.f32 %v788, %v98
    %v794 = vmul.f32 %v787, %v102
    %795 = vrot.lane.b32.xlu0 %v774, 16
    %v796 = vpop.permute.xlu0 %795
    %797 = vrot.lane.b32.xlu0 %v775, 16
    %v798 = vpop.permute.xlu0 %797
    %799 = vrot.lane.b32.xlu0 %v776, 16
    %v800 = vpop.permute.xlu0 %799
    %801 = vrot.lane.b32.xlu0 %v777, 16
    %v802 = vpop.permute.xlu0 %801
    %v803 = vsel %vm115, %v800, %v802
    %v804 = vsel %vm115, %v798, %v800
    %v805 = vsel %vm115, %v796, %v798
    %v806 = vsel %vm115, %v802, %v796
    %v807 = vmul.f32 %v806, %v123
    %v808 = vmul.f32 %v805, %v127
    %v809 = vmul.f32 %v804, %v131
    %v810 = vmul.f32 %v803, %v135
    %811 = vrot.lane.b32.xlu0 %v774, 15
    %v812 = vpop.permute.xlu0 %811
    %813 = vrot.lane.b32.xlu0 %v775, 15
    %v814 = vpop.permute.xlu0 %813
    %815 = vrot.lane.b32.xlu0 %v776, 15
    %v816 = vpop.permute.xlu0 %815
    %817 = vrot.lane.b32.xlu0 %v777, 15
    %v818 = vpop.permute.xlu0 %817
    %v819 = vsel %vm148, %v816, %v818
    %v820 = vsel %vm148, %v814, %v816
    %v821 = vsel %vm148, %v812, %v814
    %v822 = vsel %vm148, %v818, %v812
    %v823 = vmul.f32 %v822, %v156
    %v824 = vmul.f32 %v821, %v160
    %v825 = vmul.f32 %v820, %v164
    %v826 = vmul.f32 %v819, %v168
    %827 = vrot.lane.b32.xlu0 %v774, 1
    %v828 = vpop.permute.xlu0 %827
    %829 = vrot.lane.b32.xlu0 %v775, 1
    %v830 = vpop.permute.xlu0 %829
    %831 = vrot.lane.b32.xlu0 %v776, 1
    %v832 = vpop.permute.xlu0 %831
    %833 = vrot.lane.b32.xlu0 %v777, 1
    %v834 = vpop.permute.xlu0 %833
    %v835 = vsel %vm181, %v832, %v834
    %v836 = vsel %vm181, %v830, %v832
    %v837 = vsel %vm181, %v828, %v830
    %v838 = vsel %vm181, %v834, %v828
    %v839 = vmul.f32 %v838, %v189
    %v840 = vmul.f32 %v837, %v193
    %v841 = vmul.f32 %v836, %v197
    %v842 = vmul.f32 %v835, %v201
    %843 = vrot.lane.b32.xlu0 %v774, 127
    %v844 = vpop.permute.xlu0 %843
    %845 = vrot.lane.b32.xlu0 %v775, 127
    %v846 = vpop.permute.xlu0 %845
    %847 = vrot.lane.b32.xlu0 %v776, 127
    %v848 = vpop.permute.xlu0 %847
    %849 = vrot.lane.b32.xlu0 %v777, 127
    %v850 = vpop.permute.xlu0 %849
    %v851 = vsel %vm214, %v848, %v850
    %v852 = vsel %vm214, %v846, %v848
    %v853 = vsel %vm214, %v844, %v846
    %v854 = vsel %vm214, %v850, %v844
    %v855 = vmul.f32 %v853, %v222
    %v856 = vmul.f32 %v852, %v226
    %v857 = vmul.f32 %v851, %v230
    %v858 = vmul.f32 %v854, %v234
    %859 = vrot.lane.b32.xlu0 %v774, 113
    %v860 = vpop.permute.xlu0 %859
    %861 = vrot.lane.b32.xlu0 %v775, 113
    %v862 = vpop.permute.xlu0 %861
    %863 = vrot.lane.b32.xlu0 %v776, 113
    %v864 = vpop.permute.xlu0 %863
    %865 = vrot.lane.b32.xlu0 %v777, 113
    %v866 = vpop.permute.xlu0 %865
    %v867 = vsel %vm247, %v864, %v866
    %v868 = vsel %vm247, %v862, %v864
    %v869 = vsel %vm247, %v860, %v862
    %v870 = vsel %vm247, %v866, %v860
    %v871 = vmul.f32 %v869, %v255
    %v872 = vmul.f32 %v868, %v259
    %v873 = vmul.f32 %v867, %v263
    %v874 = vmul.f32 %v870, %v267
    %875 = vrot.lane.b32.xlu0 %v774, 112
    %v876 = vpop.permute.xlu0 %875
    %877 = vrot.lane.b32.xlu0 %v775, 112
    %v878 = vpop.permute.xlu0 %877
    %879 = vrot.lane.b32.xlu0 %v776, 112
    %v880 = vpop.permute.xlu0 %879
    %881 = vrot.lane.b32.xlu0 %v777, 112
    %v882 = vpop.permute.xlu0 %881
    %v883 = vsel %vm280, %v880, %v882
    %v884 = vsel %vm280, %v878, %v880
    %v885 = vsel %vm280, %v876, %v878
    %v886 = vsel %vm280, %v882, %v876
    %v887 = vmul.f32 %v885, %v288
    %v888 = vmul.f32 %v884, %v292
    %v889 = vmul.f32 %v883, %v296
    %v890 = vmul.f32 %v886, %v300
    %891 = vrot.lane.b32.xlu0 %v774, 111
    %v892 = vpop.permute.xlu0 %891
    %893 = vrot.lane.b32.xlu0 %v775, 111
    %v894 = vpop.permute.xlu0 %893
    %895 = vrot.lane.b32.xlu0 %v776, 111
    %v896 = vpop.permute.xlu0 %895
    %897 = vrot.lane.b32.xlu0 %v777, 111
    %v898 = vpop.permute.xlu0 %897
    %v899 = vsel %vm313, %v896, %v898
    %v900 = vsel %vm313, %v894, %v896
    %v901 = vsel %vm313, %v892, %v894
    %v902 = vsel %vm313, %v898, %v892
    %v903 = vmul.f32 %v901, %v321
    %v904 = vmul.f32 %v900, %v325
    %v905 = vmul.f32 %v899, %v329
    %v906 = vmul.f32 %v902, %v333
    %v907 = vld [vmem:[%s7] sm:$0x3]
    %909 = vset.pattern.permute.xlu0 0
    %910 = vperm.xlu0 %909, %v907
    %v911 = vpop.permute.xlu0 %910
    %v914 = vsel %vm344, %v778, 0
    %916 = vmatprep.subr.mxu0 0.0
    %917 = vmatpush1.msra.mxu0 0.0
    %918 = vmatprep.subr.mxu0 0.0
    %919 = vmatpush1.msra.mxu0 0.0
    %920 = vmatprep.subr.mxu0 0.0
    %921 = vmatpush1.msra.mxu0 0.0
    %922 = vmatprep.subr.mxu0 0.0
    %923 = vmatpush1.msra.mxu0 0.0
    %924 = vmatprep.subr.mxu0 0.0
    %925 = vmatpush1.msra.mxu0 0.0
    %926 = vmatprep.subr.mxu0 0.0
    %927 = vmatpush1.msra.mxu0 0.0
    %928 = vmatprep.subr.mxu0 0.0
    %929 = vmatpush1.msra.mxu0 0.0
    %930 = vmatprep.subr.mxu0 %v904
    %931 = vmatpush1.msra.mxu0 %v903
    %932 = vmatprep.subr.mxu0 %v888
    %933 = vmatpush1.msra.mxu0 %v887
    %934 = vmatprep.subr.mxu0 %v872
    %935 = vmatpush1.msra.mxu0 %v871
    %936 = vmatprep.subr.mxu0 %v856
    %937 = vmatpush1.msra.mxu0 %v855
    %938 = vmatprep.subr.mxu0 %v775
    %939 = vmatpush1.msra.mxu0 %v774
    %940 = vmatprep.subr.mxu0 %v840
    %941 = vmatpush1.msra.mxu0 %v839
    %942 = vmatprep.subr.mxu0 %v824
    %943 = vmatpush1.msra.mxu0 %v823
    %944 = vmatprep.subr.mxu0 %v808
    %945 = vmatpush1.msra.mxu0 %v807
    %946 = vmatprep.subr.mxu0 %v792
    %947 = vmatpush1.msra.mxu0 %v791
    %948 = vmatprep.subr.mxu0 0.0
    %949 = vmatpush2.msra.mxu0 0.0
    %950 = vmatprep.subr.mxu0 0.0
    %951 = vmatpush2.msra.mxu0 0.0
    %952 = vmatprep.subr.mxu0 0.0
    %953 = vmatpush2.msra.mxu0 0.0
    %954 = vmatprep.subr.mxu0 0.0
    %955 = vmatpush2.msra.mxu0 0.0
    %956 = vmatprep.subr.mxu0 0.0
    %957 = vmatpush2.msra.mxu0 0.0
    %958 = vmatprep.subr.mxu0 0.0
    %959 = vmatpush2.msra.mxu0 0.0
    %960 = vmatprep.subr.mxu0 0.0
    %961 = vmatpush2.msra.mxu0 0.0
    %962 = vmatprep.subr.mxu0 0.0
    %963 = vmatpush2.msra.mxu0 0.0
    %964 = vmatprep.subr.mxu0 0.0
    %965 = vmatpush2.msra.mxu0 0.0
    %966 = vmatprep.subr.mxu0 0.0
    %967 = vmatpush2.msra.mxu0 0.0
    %968 = vmatprep.subr.mxu0 0.0
    %969 = vmatpush2.msra.mxu0 0.0
    %970 = vmatprep.subr.mxu0 0.0
    %971 = vmatpush2.msra.mxu0 0.0
    %972 = vmatprep.subr.mxu0 0.0
    %973 = vmatpush2.msra.mxu0 0.0
    %974 = vmatprep.subr.mxu0 0.0
    %975 = vmatpush2.msra.mxu0 0.0
    %976 = vmatprep.subr.mxu0 0.0
    %977 = vmatpush2.msra.mxu0 0.0
    %978 = vmatprep.subr.mxu0 0.0
    %979 = vmatpush2.msra.mxu0 0.0
    %980 = vmatprep.mubr.f32.mxu0 0.0
    %981 = vmatmul.mubr.f32.gmra.mxu0 %v914
    %v982 = vpop.f32.mrf.mxu0
    %v983 = vadd.f32 %v911, %v982
    %v984 = vpop.f32.mrf.mxu0
    %v985 = vadd.f32 %v911, %v984
    %986 = vdwg.mxu0
    %987 = vmatprep.subr.mxu0 0.0
    %988 = vmatpush1.msra.mxu0 0.0
    %989 = vmatprep.subr.mxu0 0.0
    %990 = vmatpush1.msra.mxu0 0.0
    %991 = vmatprep.subr.mxu0 0.0
    %992 = vmatpush1.msra.mxu0 0.0
    %993 = vmatprep.subr.mxu0 0.0
    %994 = vmatpush1.msra.mxu0 0.0
    %995 = vmatprep.subr.mxu0 0.0
    %996 = vmatpush1.msra.mxu0 0.0
    %997 = vmatprep.subr.mxu0 0.0
    %998 = vmatpush1.msra.mxu0 0.0
    %999 = vmatprep.subr.mxu0 0.0
    %1000 = vmatpush1.msra.mxu0 0.0
    %1001 = vmatprep.subr.mxu0 %v906
    %1002 = vmatpush1.msra.mxu0 %v905
    %1003 = vmatprep.subr.mxu0 %v890
    %1004 = vmatpush1.msra.mxu0 %v889
    %1005 = vmatprep.subr.mxu0 %v874
    %1006 = vmatpush1.msra.mxu0 %v873
    %1007 = vmatprep.subr.mxu0 %v858
    %1008 = vmatpush1.msra.mxu0 %v857
    %1009 = vmatprep.subr.mxu0 %v777
    %1010 = vmatpush1.msra.mxu0 %v776
    %1011 = vmatprep.subr.mxu0 %v842
    %1012 = vmatpush1.msra.mxu0 %v841
    %1013 = vmatprep.subr.mxu0 %v826
    %1014 = vmatpush1.msra.mxu0 %v825
    %1015 = vmatprep.subr.mxu0 %v810
    %1016 = vmatpush1.msra.mxu0 %v809
    %1017 = vmatprep.subr.mxu0 %v794
    %1018 = vmatpush1.msra.mxu0 %v793
    %1019 = vmatprep.subr.mxu0 0.0
    %1020 = vmatpush2.msra.mxu0 0.0
    %1021 = vmatprep.subr.mxu0 0.0
    %1022 = vmatpush2.msra.mxu0 0.0
    %1023 = vmatprep.subr.mxu0 0.0
    %1024 = vmatpush2.msra.mxu0 0.0
    %1025 = vmatprep.subr.mxu0 0.0
    %1026 = vmatpush2.msra.mxu0 0.0
    %1027 = vmatprep.subr.mxu0 0.0
    %1028 = vmatpush2.msra.mxu0 0.0
    %1029 = vmatprep.subr.mxu0 0.0
    %1030 = vmatpush2.msra.mxu0 0.0
    %1031 = vmatprep.subr.mxu0 0.0
    %1032 = vmatpush2.msra.mxu0 0.0
    %1033 = vmatprep.subr.mxu0 0.0
    %1034 = vmatpush2.msra.mxu0 0.0
    %1035 = vmatprep.subr.mxu0 0.0
    %1036 = vmatpush2.msra.mxu0 0.0
    %1037 = vmatprep.subr.mxu0 0.0
    %1038 = vmatpush2.msra.mxu0 0.0
    %1039 = vmatprep.subr.mxu0 0.0
    %1040 = vmatpush2.msra.mxu0 0.0
    %1041 = vmatprep.subr.mxu0 0.0
    %1042 = vmatpush2.msra.mxu0 0.0
    %1043 = vmatprep.subr.mxu0 0.0
    %1044 = vmatpush2.msra.mxu0 0.0
    %1045 = vmatprep.subr.mxu0 0.0
    %1046 = vmatpush2.msra.mxu0 0.0
    %1047 = vmatprep.subr.mxu0 0.0
    %1048 = vmatpush2.msra.mxu0 0.0
    %1049 = vmatprep.subr.mxu0 0.0
    %1050 = vmatpush2.msra.mxu0 0.0
    %1051 = vmatprep.mubr.f32.mxu0 0.0
    %1052 = vmatmul.mubr.f32.gmra.mxu0 %v914
    %v1053 = vpop.f32.mrf.mxu0
    %v1054 = vadd.f32 %v911, %v1053
    %v1055 = vpop.f32.mrf.mxu0
    %v1056 = vadd.f32 %v911, %v1055
    %1057 = vdwg.mxu0
    %v1058 = vld [vmem:[%s8] ss:$2 sm:$0x3]
    %s1059 = scalar_lea.vmem %s8, 1
    %v1060 = vld [vmem:[%s1059] ss:$2 sm:$0x3]
    %vm1061 = vcmask 1041408
    %v1062 = vsel %vm1061, %v983, -inf
    %v1063 = vsel %vm1061, %v985, -inf
    %v1064 = vmax.f32 %v1062, %v1063
    %1065 = vmax.xlane.f32.xlu0 %v1064
    %v1066 = vpop.xlane.xlu0 %1065
    %v1067 = vsub.f32 %v983, %v1066
    %v1068 = vsub.f32 %v985, %v1066
    %v1069 = vmul.f32 %v1067, 1.442695
    %v1070 = vpow.pop %v1069
    %v1071 = vmul.f32 %v1068, 1.442695
    %v1072 = vpow.pop %v1071
    %v1073 = vsel %vm1061, %v1070, 0.0
    %v1074 = vsel %vm1061, %v1072, 0.0
    %v1075 = vadd.f32 %v1073, %v1074
    %1076 = vadd.xlane.f32.xlu0 %v1075
    %v1077 = vpop.xlane.xlu0 %1076
    %v1078 = vrcp.pop %v1077
    %v1079 = vmul.f32 1.0, %v1078
    %v1081 = vlaneseq
    %v1082 = vshrl.u32 %v1081, 7
    %v1083 = vsub.s32 0, %v1082
    %v1084 = vrot.slane %v1058, %v1083
    %v1085 = vlaneseq
    %v1086 = vshrl.u32 %v1085, 7
    %v1087 = vsub.s32 1, %v1086
    %v1088 = vrot.slane %v1058, %v1087
    %v1091 = vmul.f32 %v1070, %v1084
    %v1092 = vmul.f32 %v1072, %v1088
    %v1093 = vsel %vm1061, %v1091, 0.0
    %v1094 = vsel %vm1061, %v1092, 0.0
    %v1095 = vadd.f32 %v1093, %v1094
    %1096 = vadd.xlane.f32.xlu0 %v1095
    %v1097 = vpop.xlane.xlu0 %1096
    %v1098 = vmul.f32 %v1097, %v1079
    %v1100 = vlaneseq
    %v1101 = vshrl.u32 %v1100, 7
    %v1102 = vsub.s32 0, %v1101
    %v1103 = vrot.slane %v1060, %v1102
    %v1104 = vlaneseq
    %v1105 = vshrl.u32 %v1104, 7
    %v1106 = vsub.s32 1, %v1105
    %v1107 = vrot.slane %v1060, %v1106
    %v1110 = vmul.f32 %v1070, %v1103
    %v1111 = vmul.f32 %v1072, %v1107
    %v1112 = vsel %vm1061, %v1110, 0.0
    %v1113 = vsel %vm1061, %v1111, 0.0
    %v1114 = vadd.f32 %v1112, %v1113
    %1115 = vadd.xlane.f32.xlu0 %v1114
    %v1116 = vpop.xlane.xlu0 %1115
    %v1117 = vmul.f32 %v1116, %v1079
    %v1119 = vrot.slane %v1098, 1
    %v1122 = vrot.slane %v1117, 1
    %vm1124 = vcmask 7168
    %v1125 = vsel %vm1124, %v1098, %v1117
    %vm1126 = vcmask 15360
    %v1127 = vsel %vm1126, %v1125, %v1119
    %vm1128 = vcmask 23552
    %v1129 = vsel %vm1128, %v1127, %v1122
    %v1130 = vsel %vm1061, %v1054, -inf
    %v1131 = vsel %vm1061, %v1056, -inf
    %v1132 = vmax.f32 %v1130, %v1131
    %1133 = vmax.xlane.f32.xlu0 %v1132
    %v1134 = vpop.xlane.xlu0 %1133
    %v1135 = vsub.f32 %v1054, %v1134
    %v1136 = vsub.f32 %v1056, %v1134
    %v1137 = vmul.f32 %v1135, 1.442695
    %v1138 = vpow.pop %v1137
    %v1139 = vmul.f32 %v1136, 1.442695
    %v1140 = vpow.pop %v1139
    %v1141 = vsel %vm1061, %v1138, 0.0
    %v1142 = vsel %vm1061, %v1140, 0.0
    %v1143 = vadd.f32 %v1141, %v1142
    %1144 = vadd.xlane.f32.xlu0 %v1143
    %v1145 = vpop.xlane.xlu0 %1144
    %v1146 = vrcp.pop %v1145
    %v1147 = vmul.f32 1.0, %v1146
    %v1148 = vmul.f32 %v1138, %v1084
    %v1149 = vmul.f32 %v1140, %v1088
    %v1150 = vsel %vm1061, %v1148, 0.0
    %v1151 = vsel %vm1061, %v1149, 0.0
    %v1152 = vadd.f32 %v1150, %v1151
    %1153 = vadd.xlane.f32.xlu0 %v1152
    %v1154 = vpop.xlane.xlu0 %1153
    %v1155 = vmul.f32 %v1154, %v1147
    %v1156 = vmul.f32 %v1138, %v1103
    %v1157 = vmul.f32 %v1140, %v1107
    %v1158 = vsel %vm1061, %v1156, 0.0
    %v1159 = vsel %vm1061, %v1157, 0.0
    %v1160 = vadd.f32 %v1158, %v1159
    %1161 = vadd.xlane.f32.xlu0 %v1160
    %v1162 = vpop.xlane.xlu0 %1161
    %v1163 = vmul.f32 %v1162, %v1147
    %v1165 = vrot.slane %v1155, 1
    %v1168 = vrot.slane %v1163, 1
    %v1170 = vsel %vm1124, %v1155, %v1163
    %v1171 = vsel %vm1126, %v1170, %v1165
    %v1172 = vsel %vm1128, %v1171, %v1168
    %v1174 = vrot.slane %v1172, 7
    %vm1176 = vcmask 1040384
    %v1177 = vsel %vm1176, %v1129, %v1174
    %vm1178 = vcmask 25600
    %1179 = vst.msk [vmem:[#allocation7] sm:$0x3] %vm1178, %v1177
    // Predicated region
    $region46: #{tpu_custom_call.1} parent=1 // pred_check
      _
    $region47: #{tpu_custom_call.1} parent=1 // pred_check_branch
      %1181 = sbr.rel (0) target = $region49
    $region48: #{tpu_custom_call.1} parent=1 // pred_region
      %s1183 = ssub.s32 32, 32
      %1184 = vsyncadd [#allocation4], %s1183
      %s1186 = sshll.u32 [#allocation7], 4
      %s1187 = int_to_ptr.vmem [resolvable:$true] %s1186
      %1189 = dma.vmem_to_hbm [thread:$0]  %s1187, 32, %s9, [#allocation4]
    $region49: #{tpu_custom_call.1} parent=1 // pred_fallthru
      _
    // Predicated region
    $region50: #{tpu_custom_call.1} parent=1 // pred_check
      _
    $region51: #{tpu_custom_call.1} parent=1 // pred_check_branch
      %1191 = sbr.rel (0) target = $region53
    $region52: #{tpu_custom_call.1} parent=1 // pred_region
      %1192 = dma.done [#allocation4], 32
    $region53: #{tpu_custom_call.1} parent=1 // pred_fallthru
      _
    %1193 = vsyncpa [#allocation3], 1
    %1194 = vsyncpa [#allocation6], 1
    %1195 = vsyncpa [#allocation4], 1

</llo_original>
